<compile_context>
chip_gen: v5e
topology: v5e:2x2
jax: 0.10.0
libtpu: 0.0.40
codegen_flags: <defaults>
</compile_context>

<pallas_src>
import functools

import jax
import jax.numpy as jnp
from jax import lax
from jax.experimental import pallas as pl
from jax.experimental.pallas import tpu as pltpu

_LANES = 128


# --------------------------------------------------------------------------
# Coordinate-grid helpers (plain JAX, used by the reference) — mirror of
# the PyTorch make_coord / get_local_grid / get_cell.
# --------------------------------------------------------------------------
def make_coord(shape):
    """Coordinates at grid centers in [-1, 1], shape (H, W, 2)."""
    seqs = []
    for n in shape:
        r = 1.0 / n  # (v1 - v0) / (2*n) with (v0, v1) = (-1, 1)
        seqs.append(-1.0 + r + 2.0 * r * jnp.arange(n, dtype=jnp.float32))
    return jnp.stack(jnp.meshgrid(*seqs, indexing="ij"), axis=-1)


def get_local_grid_nhwc(batch, h, w):
    g = make_coord((h, w))                       # (H, W, 2)
    return jnp.broadcast_to(g[None], (batch, h, w, 2))


def get_cell_nhwc(local_grid, ref_h, ref_w):
    cell = jnp.ones_like(local_grid)
    scale = jnp.array([2.0 / ref_h, 2.0 / ref_w], dtype=jnp.float32)
    return cell * scale


# --------------------------------------------------------------------------
# Fused Pallas kernel.  Blocks are (C, S, 128): pixel rows in sublanes,
# 128 pixels in lanes, one fully-packed slab per channel.  All math is f32;
# stores cast to the output ref dtype.  Tiny weights come from SMEM scalars.
# --------------------------------------------------------------------------
def _compass_kernel(H, W, full_outputs,
                    img_base_ref, img_el1_ref, img_el2_ref, prm,
                    *out_refs):
    f32 = jnp.float32
    C, S, L = img_base_ref.shape

    # Packed-parameter offsets (host packs row-major in this exact order).
    W_BASE = 0
    B_BASE = W_BASE + C * C
    W_EL = B_BASE + C
    B_EL = W_EL + C * C
    WPX = B_EL + C
    WG = WPX + C * C
    BP1 = WG + 2 * C
    BP2 = BP1 + C

    def w(i):                      # scalar parameter read from SMEM (splat)
        return prm[0, i]

    def mixc(xs, w_off, c_out):
        # out[c_out] = sum_{c_in} w[c_in, c_out] * xs[c_in]  (VPU scalar FMAs)
        acc = w(w_off + c_out) * xs[0]
        for c_in in range(1, C):
            acc = acc + w(w_off + c_in * C + c_out) * xs[c_in]
        return acc

    # ---- per-tile coordinate grid, generated on-chip (no HBM stream) -----
    base_px = (pl.program_id(1) * (S * L)).astype(f32)
    s_iota = lax.broadcasted_iota(jnp.int32, (S, L), 0).astype(f32)
    l_iota = lax.broadcasted_iota(jnp.int32, (S, L), 1).astype(f32)
    p = base_px + s_iota * float(L) + l_iota          # flat pixel index, exact
    w_f = float(W)
    row = jnp.floor(p * (1.0 / W))                    # reciprocal mul, not vdiv
    col = p - row * w_f
    row = (row + jnp.where(col < 0.0, -1.0, 0.0)      # corrective selects make
               + jnp.where(col >= w_f, 1.0, 0.0))     # the div/mod exact
    col = p - row * w_f
    rowc = row * (2.0 / H) + (1.0 / H - 1.0)
    colc = col * (2.0 / W) + (1.0 / W - 1.0)
    gterm = [w(WG + c) * rowc + w(WG + C + c) * colc for c in range(C)]

    xb = [img_base_ref[c].astype(f32) for c in range(C)]
    x1 = [img_el1_ref[c].astype(f32) for c in range(C)]
    x2 = [img_el2_ref[c].astype(f32) for c in range(C)]

    # ---- base codec (synthetic 1x1 conv) ----------------------------------
    xhat_base = [mixc(xb, W_BASE, c) + w(B_BASE + c) for c in range(C)]

    # ---- level 1 (cell term pre-folded into BP1 on the host) --------------
    pred1 = [mixc(xhat_base, WPX, c) + gterm[c] + w(BP1 + c) for c in range(C)]
    el1 = [x1[c] - pred1[c] for c in range(C)]
    xel1 = [mixc(el1, W_EL, c) + w(B_EL + c) for c in range(C)]
    out1 = [xel1[c] + pred1[c] for c in range(C)]

    # ---- level 2 -----------------------------------------------------------
    pred2 = [mixc(out1, WPX, c) + gterm[c] + w(BP2 + c) for c in range(C)]
    el2 = [x2[c] - pred2[c] for c in range(C)]
    xel2 = [mixc(el2, W_EL, c) + w(B_EL + c) for c in range(C)]
    out2 = [xel2[c] + pred2[c] for c in range(C)]

    if full_outputs:
        stores = tuple(zip(out_refs, (out1, out2, xel1, xel2, el1, el2)))
    else:
        stores = tuple(zip(out_refs, (out1, out2)))
    for ref, vals in stores:
        for c in range(C):
            ref[c] = vals[c].astype(ref.dtype)


def compass_forward(img_base, img_el1, img_el2, params, *,
                    tile_rows=256, out_dtype=jnp.bfloat16, full_outputs=True):
    """img_* are NCHW float arrays (B, C, H, W) of identical shape.

    full_outputs=True  -> (out1, out2, x_hat_el1, x_hat_el2, el1, el2)
    full_outputs=False -> (out1, out2)  (el/x_hat_el recoverable by the caller)
    Outputs are in `out_dtype` (bfloat16 default; float32 for exact semantics).
    """
    # TODO(synk): the real model_prediction (LIIF-style) supports enhancement
    # layers at different resolutions; the synthetic 1x1-conv stand-ins
    # require all three layers to share one spatial size.
    assert img_base.shape == img_el1.shape == img_el2.shape, \
        "synthetic COMPASS kernel requires equal shapes for all layers"
    B, C, H, W = img_base.shape
    HW = H * W
    S_total = -(-HW // _LANES)                 # pixel rows of 128 lanes
    HW_pad = S_total * _LANES
    pad = HW_pad - HW
    assert HW_pad < (1 << 24), "in-kernel f32 coordinate gen needs < 2**24 pixels"

    n_out = 6 if full_outputs else 2
    in_bytes = jnp.dtype(img_base.dtype).itemsize
    out_bytes = jnp.dtype(out_dtype).itemsize
    bytes_per_row = C * _LANES * (3 * in_bytes + n_out * out_bytes)

    # Largest pixel tile whose double-buffered blocks stay <= ~16 MiB.
    max_rows_vmem = max(8, ((16 << 20) // (2 * bytes_per_row) // 8) * 8)
    s_tile = min(tile_rows, S_total, max_rows_vmem)
    if s_tile < S_total:
        s_tile = max(8, (s_tile // 8) * 8)
        # v7x has 2 TensorCores: keep >= 4 grid programs when the image allows.
        while s_tile > 8 and B * (-(-S_total // s_tile)) < 4:
            s_tile = max(8, ((s_tile // 2) // 8) * 8)
    n_tiles = -(-S_total // s_tile)

    (w_base, b_base, w_el, b_el, wpx, wpg, wpc, bp) = params
    H1, W1 = img_el1.shape[-2:]
    # PyTorch: cell_el1 = get_cell(img_el1, ...), cell_el2 = get_cell(img_el1, ...)
    cell_vec = jnp.array([[2.0 / H1, 2.0 / W1]], jnp.float32)
    bp1 = bp + cell_vec @ wpc
    bp2 = bp + cell_vec @ wpc

    prm = jnp.concatenate([
        w_base.reshape(-1), b_base.reshape(-1),
        w_el.reshape(-1), b_el.reshape(-1),
        wpx.reshape(-1), wpg.reshape(-1),
        bp1.reshape(-1), bp2.reshape(-1),
    ]).astype(jnp.float32).reshape(1, -1)

    def to_blocks(x):
        x = x.reshape(B, C, HW)
        if pad:
            x = jnp.pad(x, ((0, 0), (0, 0), (0, pad)))
        return x.reshape(B, C, S_total, _LANES)

    xb, x1, x2 = (to_blocks(t) for t in (img_base, img_el1, img_el2))

    img_spec = pl.BlockSpec((None, C, s_tile, _LANES), lambda b, i: (b, 0, i, 0))
    prm_spec = pl.BlockSpec((1, prm.shape[1]), lambda b, i: (0, 0),
                            memory_space=pltpu.MemorySpace.SMEM)
    out_sds = jax.ShapeDtypeStruct((B, C, S_total, _LANES), out_dtype)

    # VMEM budget: double-buffered IO blocks + headroom for f32 temporaries.
    block_bytes = 2 * bytes_per_row * s_tile
    temp_bytes = 28 * s_tile * _LANES * 4
    vmem_limit = int(min(max(block_bytes + temp_bytes + (2 << 20), 16 << 20),
                         48 << 20))

    outs = pl.pallas_call(
        functools.partial(_compass_kernel, H1, W1, full_outputs),
        out_shape=(out_sds,) * n_out,
        grid_spec=pltpu.PrefetchScalarGridSpec(
            num_scalar_prefetch=0,
            grid=(B, n_tiles),
            in_specs=[img_spec, img_spec, img_spec, prm_spec],
            out_specs=[img_spec] * n_out,
        ),
        compiler_params=pltpu.CompilerParams(
            dimension_semantics=("parallel", "parallel"),
            vmem_limit_bytes=vmem_limit),
    )(xb, x1, x2, prm)

    def back(o):
        o = o.reshape(B, C, HW_pad)
        if pad:
            o = o[:, :, :HW]
        return o.reshape(B, C, H, W)

    return tuple(back(o) for o in outs)


# --------------------------------------------------------------------------
# Deterministic synthetic parameters (stand-ins for the three submodules).
# TODO(synk): the real `model` / `model_el` are full learned codecs
# (compress/decompress + entropy coding); only their x_hat channel-mixing
# behavior is modeled here as 1x1 convs.
# --------------------------------------------------------------------------
def init_params(key, C):
    keys = jax.random.split(key, 8)
    s = 0.2
    eye = jnp.eye(C, dtype=jnp.float32)
    w_base = s * jax.random.normal(keys[0], (C, C), jnp.float32) + eye
    b_base = s * jax.random.normal(keys[1], (1, C), jnp.float32)
    w_el = s * jax.random.normal(keys[2], (C, C), jnp.float32) + eye
    b_el = s * jax.random.normal(keys[3], (1, C), jnp.float32)
    wpx = s * jax.random.normal(keys[4], (C, C), jnp.float32) + eye
    wpg = s * jax.random.normal(keys[5], (2, C), jnp.float32)
    wpc = s * jax.random.normal(keys[6], (2, C), jnp.float32)
    bp = s * jax.random.normal(keys[7], (1, C), jnp.float32)
    return (w_base, b_base, w_el, b_el, wpx, wpg, wpc, bp)


# --------------------------------------------------------------------------
# Pure-JAX reference (row layout), consistent with the PyTorch forward.
# --------------------------------------------------------------------------
def compass_reference(img_base, img_el1, img_el2, params):
    B, C, H, W = img_base.shape
    (w_base, b_base, w_el, b_el, wpx, wpg, wpc, bp) = params
    H1, W1 = img_el1.shape[-2:]
    H2, W2 = img_el2.shape[-2:]
    grid1 = get_local_grid_nhwc(B, H1, W1)
    cell1 = get_cell_nhwc(grid1, H1, W1)
    grid2 = get_local_grid_nhwc(B, H2, W2)
    cell2 = get_cell_nhwc(grid2, H1, W1)   # PyTorch: get_cell(img_el1, grid_el2)

    mm = functools.partial(jnp.dot, precision=lax.Precision.HIGHEST)

    def rows(x):  # NCHW -> (M, C)
        return jnp.transpose(x, (0, 2, 3, 1)).reshape(-1, x.shape[1])

    def back(x):
        return jnp.transpose(x.reshape(B, H, W, C), (0, 3, 1, 2))

    xb, x1, x2 = rows(img_base), rows(img_el1), rows(img_el2)
    g1, c1 = grid1.reshape(-1, 2), cell1.reshape(-1, 2)
    g2, c2 = grid2.reshape(-1, 2), cell2.reshape(-1, 2)

    xhat_base = mm(xb, w_base) + b_base
    pred1 = mm(xhat_base, wpx) + mm(g1, wpg) + mm(c1, wpc) + bp
    el1 = x1 - pred1
    xel1 = mm(el1, w_el) + b_el
    out1 = xel1 + pred1
    pred2 = mm(out1, wpx) + mm(g2, wpg) + mm(c2, wpc) + bp
    el2 = x2 - pred2
    xel2 = mm(el2, w_el) + b_el
    out2 = xel2 + pred2
    return tuple(back(t) for t in (out1, out2, xel1, xel2, el1, el2))


if __name__ == "__main__":
    B, C, H, W = 2, 4, 16, 16  # HW = 256 -> 2 pixel rows, grid (2, 1)
    key = jax.random.PRNGKey(0)
    k1, k2, k3, kp = jax.random.split(key, 4)
    img_base = jax.random.uniform(k1, (B, C, H, W), jnp.float32)
    img_el1 = jax.random.uniform(k2, (B, C, H, W), jnp.float32)
    img_el2 = jax.random.uniform(k3, (B, C, H, W), jnp.float32)
    params = init_params(kp, C)

    refs = compass_reference(img_base, img_el1, img_el2, params)

    # 1) exact-semantics path: f32 outputs, all six tensors, tight tolerance.
    outs32 = jax.block_until_ready(
        compass_forward(img_base, img_el1, img_el2, params,
                        out_dtype=jnp.float32))
    for o, r in zip(outs32, refs):
        assert o.shape == r.shape
        err = float(jnp.max(jnp.abs(o - r)))
        assert err < 1e-4, err

    # 2) perf path: bf16 outputs (halved store traffic), looser tolerance.
    outsbf = jax.block_until_ready(
        compass_forward(img_base, img_el1, img_el2, params,
                        out_dtype=jnp.bfloat16))
    for o, r in zip(outsbf, refs):
        assert o.shape == r.shape
        err = float(jnp.max(jnp.abs(o.astype(jnp.float32) - r)))
        tol = 1e-2 * (1.0 + float(jnp.max(jnp.abs(r))))
        assert err < tol, (err, tol)

    # 3) minimal-output perf path: only out1/out2 stored.
    out_min = jax.block_until_ready(
        compass_forward(img_base, img_el1, img_el2, params,
                        out_dtype=jnp.bfloat16, full_outputs=False))
    assert len(out_min) == 2
    for o, r in zip(out_min, refs[:2]):
        err = float(jnp.max(jnp.abs(o.astype(jnp.float32) - r)))
        tol = 1e-2 * (1.0 + float(jnp.max(jnp.abs(r))))
        assert err < tol, (err, tol)

    # 4) non-128-divisible resolution exercises lane padding + reciprocal div.
    Ho, Wo = 12, 10   # HW = 120 -> padded to one 128-lane row
    i1 = jax.random.uniform(k1, (B, C, Ho, Wo), jnp.float32)
    i2 = jax.random.uniform(k2, (B, C, Ho, Wo), jnp.float32)
    i3 = jax.random.uniform(k3, (B, C, Ho, Wo), jnp.float32)
    refs_o = compass_reference(i1, i2, i3, params)
    outs_o = jax.block_until_ready(
        compass_forward(i1, i2, i3, params, out_dtype=jnp.float32))
    for o, r in zip(outs_o, refs_o):
        assert o.shape == r.shape
        err = float(jnp.max(jnp.abs(o - r)))
        assert err < 1e-4, err

    print("KERNEL_OK")
</pallas_src>

<mosaic_0001>
module attributes {stable_mosaic.version = 11 : i64} {
  func.func @_compass_kernel(%arg0: i32, %arg1: i32, %arg2: memref<1x4x2x128xf32, #tpu.memory_space<vmem>>, %arg3: memref<1x4x2x128xf32, #tpu.memory_space<vmem>>, %arg4: memref<1x4x2x128xf32, #tpu.memory_space<vmem>>, %arg5: memref<1x72xf32, #tpu.memory_space<smem>>, %arg6: memref<1x4x2x128xf32, #tpu.memory_space<vmem>>, %arg7: memref<1x4x2x128xf32, #tpu.memory_space<vmem>>, %arg8: memref<1x4x2x128xf32, #tpu.memory_space<vmem>>, %arg9: memref<1x4x2x128xf32, #tpu.memory_space<vmem>>, %arg10: memref<1x4x2x128xf32, #tpu.memory_space<vmem>>, %arg11: memref<1x4x2x128xf32, #tpu.memory_space<vmem>>) attributes {dimension_semantics = [#tpu.dimension_semantics<parallel>, #tpu.dimension_semantics<parallel>], iteration_bounds = array<i64: 2, 1>, scalar_prefetch = 0 : i64, scratch_operands = 0 : i64, tpu.core_type = #tpu.core_type<tc>, window_params = [{transform_indices = @transform_0, window_bounds = array<i64: 1, 4, 2, 128>}, {transform_indices = @transform_1, window_bounds = array<i64: 1, 4, 2, 128>}, {transform_indices = @transform_2, window_bounds = array<i64: 1, 4, 2, 128>}, {transform_indices = @transform_3, window_bounds = array<i64: 1, 72>}, {transform_indices = @transform_4, window_bounds = array<i64: 1, 4, 2, 128>}, {transform_indices = @transform_5, window_bounds = array<i64: 1, 4, 2, 128>}, {transform_indices = @transform_6, window_bounds = array<i64: 1, 4, 2, 128>}, {transform_indices = @transform_7, window_bounds = array<i64: 1, 4, 2, 128>}, {transform_indices = @transform_8, window_bounds = array<i64: 1, 4, 2, 128>}, {transform_indices = @transform_9, window_bounds = array<i64: 1, 4, 2, 128>}]} {
    %c256_i32 = arith.constant 256 : i32
    %0 = arith.muli %arg1, %c256_i32 : i32
    %1 = arith.sitofp %0 : i32 to f32
    %2 = tpu.iota {dimensions = array<i32: 0>} : vector<2x128xi32>
    %3 = arith.sitofp %2 : vector<2x128xi32> to vector<2x128xf32>
    %4 = tpu.iota {dimensions = array<i32: 1>} : vector<2x128xi32>
    %5 = arith.sitofp %4 : vector<2x128xi32> to vector<2x128xf32>
    %cst = arith.constant 1.280000e+02 : f32
    %6 = vector.broadcast %cst : f32 to vector<2x128xf32>
    %7 = arith.mulf %3, %6 : vector<2x128xf32>
    %8 = vector.broadcast %1 : f32 to vector<2x128xf32>
    %9 = arith.addf %8, %7 : vector<2x128xf32>
    %10 = arith.addf %9, %5 : vector<2x128xf32>
    %cst_0 = arith.constant 6.250000e-02 : f32
    %11 = vector.broadcast %cst_0 : f32 to vector<2x128xf32>
    %12 = arith.mulf %10, %11 : vector<2x128xf32>
    %13 = math.floor %12 : vector<2x128xf32>
    %cst_1 = arith.constant 1.600000e+01 : f32
    %14 = vector.broadcast %cst_1 : f32 to vector<2x128xf32>
    %15 = arith.mulf %13, %14 : vector<2x128xf32>
    %16 = arith.subf %10, %15 : vector<2x128xf32>
    %cst_2 = arith.constant 0.000000e+00 : f32
    %17 = vector.broadcast %cst_2 : f32 to vector<2x128xf32>
    %18 = arith.cmpf olt, %16, %17 : vector<2x128xf32>
    %cst_3 = arith.constant -1.000000e+00 : f32
    %cst_4 = arith.constant 0.000000e+00 : f32
    %19 = vector.broadcast %cst_3 : f32 to vector<2x128xf32>
    %20 = vector.broadcast %cst_4 : f32 to vector<2x128xf32>
    %21 = arith.select %18, %19, %20 : vector<2x128xi1>, vector<2x128xf32>
    %22 = arith.addf %13, %21 : vector<2x128xf32>
    %cst_5 = arith.constant 1.600000e+01 : f32
    %23 = vector.broadcast %cst_5 : f32 to vector<2x128xf32>
    %24 = arith.cmpf oge, %16, %23 : vector<2x128xf32>
    %cst_6 = arith.constant 1.000000e+00 : f32
    %cst_7 = arith.constant 0.000000e+00 : f32
    %25 = vector.broadcast %cst_6 : f32 to vector<2x128xf32>
    %26 = vector.broadcast %cst_7 : f32 to vector<2x128xf32>
    %27 = arith.select %24, %25, %26 : vector<2x128xi1>, vector<2x128xf32>
    %28 = arith.addf %22, %27 : vector<2x128xf32>
    %cst_8 = arith.constant 1.600000e+01 : f32
    %29 = vector.broadcast %cst_8 : f32 to vector<2x128xf32>
    %30 = arith.mulf %28, %29 : vector<2x128xf32>
    %31 = arith.subf %10, %30 : vector<2x128xf32>
    %cst_9 = arith.constant 1.250000e-01 : f32
    %32 = vector.broadcast %cst_9 : f32 to vector<2x128xf32>
    %33 = arith.mulf %28, %32 : vector<2x128xf32>
    %cst_10 = arith.constant -9.375000e-01 : f32
    %34 = vector.broadcast %cst_10 : f32 to vector<2x128xf32>
    %35 = arith.addf %33, %34 : vector<2x128xf32>
    %cst_11 = arith.constant 1.250000e-01 : f32
    %36 = vector.broadcast %cst_11 : f32 to vector<2x128xf32>
    %37 = arith.mulf %31, %36 : vector<2x128xf32>
    %cst_12 = arith.constant -9.375000e-01 : f32
    %38 = vector.broadcast %cst_12 : f32 to vector<2x128xf32>
    %39 = arith.addf %37, %38 : vector<2x128xf32>
    %c0 = arith.constant 0 : index
    %c56 = arith.constant 56 : index
    %40 = memref.load %arg5[%c0, %c56] : memref<1x72xf32, #tpu.memory_space<smem>>
    %41 = vector.broadcast %40 : f32 to vector<2x128xf32>
    %42 = arith.mulf %41, %35 : vector<2x128xf32>
    %c0_13 = arith.constant 0 : index
    %c60 = arith.constant 60 : index
    %43 = memref.load %arg5[%c0_13, %c60] : memref<1x72xf32, #tpu.memory_space<smem>>
    %44 = vector.broadcast %43 : f32 to vector<2x128xf32>
    %45 = arith.mulf %44, %39 : vector<2x128xf32>
    %46 = arith.addf %42, %45 : vector<2x128xf32>
    %c0_14 = arith.constant 0 : index
    %c57 = arith.constant 57 : index
    %47 = memref.load %arg5[%c0_14, %c57] : memref<1x72xf32, #tpu.memory_space<smem>>
    %48 = vector.broadcast %47 : f32 to vector<2x128xf32>
    %49 = arith.mulf %48, %35 : vector<2x128xf32>
    %c0_15 = arith.constant 0 : index
    %c61 = arith.constant 61 : index
    %50 = memref.load %arg5[%c0_15, %c61] : memref<1x72xf32, #tpu.memory_space<smem>>
    %51 = vector.broadcast %50 : f32 to vector<2x128xf32>
    %52 = arith.mulf %51, %39 : vector<2x128xf32>
    %53 = arith.addf %49, %52 : vector<2x128xf32>
    %c0_16 = arith.constant 0 : index
    %c58 = arith.constant 58 : index
    %54 = memref.load %arg5[%c0_16, %c58] : memref<1x72xf32, #tpu.memory_space<smem>>
    %55 = vector.broadcast %54 : f32 to vector<2x128xf32>
    %56 = arith.mulf %55, %35 : vector<2x128xf32>
    %c0_17 = arith.constant 0 : index
    %c62 = arith.constant 62 : index
    %57 = memref.load %arg5[%c0_17, %c62] : memref<1x72xf32, #tpu.memory_space<smem>>
    %58 = vector.broadcast %57 : f32 to vector<2x128xf32>
    %59 = arith.mulf %58, %39 : vector<2x128xf32>
    %60 = arith.addf %56, %59 : vector<2x128xf32>
    %c0_18 = arith.constant 0 : index
    %c59 = arith.constant 59 : index
    %61 = memref.load %arg5[%c0_18, %c59] : memref<1x72xf32, #tpu.memory_space<smem>>
    %62 = vector.broadcast %61 : f32 to vector<2x128xf32>
    %63 = arith.mulf %62, %35 : vector<2x128xf32>
    %c0_19 = arith.constant 0 : index
    %c63 = arith.constant 63 : index
    %64 = memref.load %arg5[%c0_19, %c63] : memref<1x72xf32, #tpu.memory_space<smem>>
    %65 = vector.broadcast %64 : f32 to vector<2x128xf32>
    %66 = arith.mulf %65, %39 : vector<2x128xf32>
    %67 = arith.addf %63, %66 : vector<2x128xf32>
    %c0_20 = arith.constant 0 : index
    %c0_21 = arith.constant 0 : index
    %c0_22 = arith.constant 0 : index
    %c0_23 = arith.constant 0 : index
    %68 = vector.load %arg2[%c0_20, %c0_21, %c0_22, %c0_23] : memref<1x4x2x128xf32, #tpu.memory_space<vmem>>, vector<1x1x2x128xf32>
    %69 = vector.shape_cast %68 : vector<1x1x2x128xf32> to vector<2x128xf32>
    %c0_24 = arith.constant 0 : index
    %c1 = arith.constant 1 : index
    %c0_25 = arith.constant 0 : index
    %c0_26 = arith.constant 0 : index
    %70 = vector.load %arg2[%c0_24, %c1, %c0_25, %c0_26] : memref<1x4x2x128xf32, #tpu.memory_space<vmem>>, vector<1x1x2x128xf32>
    %71 = vector.shape_cast %70 : vector<1x1x2x128xf32> to vector<2x128xf32>
    %c0_27 = arith.constant 0 : index
    %c2 = arith.constant 2 : index
    %c0_28 = arith.constant 0 : index
    %c0_29 = arith.constant 0 : index
    %72 = vector.load %arg2[%c0_27, %c2, %c0_28, %c0_29] : memref<1x4x2x128xf32, #tpu.memory_space<vmem>>, vector<1x1x2x128xf32>
    %73 = vector.shape_cast %72 : vector<1x1x2x128xf32> to vector<2x128xf32>
    %c0_30 = arith.constant 0 : index
    %c3 = arith.constant 3 : index
    %c0_31 = arith.constant 0 : index
    %c0_32 = arith.constant 0 : index
    %74 = vector.load %arg2[%c0_30, %c3, %c0_31, %c0_32] : memref<1x4x2x128xf32, #tpu.memory_space<vmem>>, vector<1x1x2x128xf32>
    %75 = vector.shape_cast %74 : vector<1x1x2x128xf32> to vector<2x128xf32>
    %c0_33 = arith.constant 0 : index
    %c0_34 = arith.constant 0 : index
    %c0_35 = arith.constant 0 : index
    %c0_36 = arith.constant 0 : index
    %76 = vector.load %arg3[%c0_33, %c0_34, %c0_35, %c0_36] : memref<1x4x2x128xf32, #tpu.memory_space<vmem>>, vector<1x1x2x128xf32>
    %77 = vector.shape_cast %76 : vector<1x1x2x128xf32> to vector<2x128xf32>
    %c0_37 = arith.constant 0 : index
    %c1_38 = arith.constant 1 : index
    %c0_39 = arith.constant 0 : index
    %c0_40 = arith.constant 0 : index
    %78 = vector.load %arg3[%c0_37, %c1_38, %c0_39, %c0_40] : memref<1x4x2x128xf32, #tpu.memory_space<vmem>>, vector<1x1x2x128xf32>
    %79 = vector.shape_cast %78 : vector<1x1x2x128xf32> to vector<2x128xf32>
    %c0_41 = arith.constant 0 : index
    %c2_42 = arith.constant 2 : index
    %c0_43 = arith.constant 0 : index
    %c0_44 = arith.constant 0 : index
    %80 = vector.load %arg3[%c0_41, %c2_42, %c0_43, %c0_44] : memref<1x4x2x128xf32, #tpu.memory_space<vmem>>, vector<1x1x2x128xf32>
    %81 = vector.shape_cast %80 : vector<1x1x2x128xf32> to vector<2x128xf32>
    %c0_45 = arith.constant 0 : index
    %c3_46 = arith.constant 3 : index
    %c0_47 = arith.constant 0 : index
    %c0_48 = arith.constant 0 : index
    %82 = vector.load %arg3[%c0_45, %c3_46, %c0_47, %c0_48] : memref<1x4x2x128xf32, #tpu.memory_space<vmem>>, vector<1x1x2x128xf32>
    %83 = vector.shape_cast %82 : vector<1x1x2x128xf32> to vector<2x128xf32>
    %c0_49 = arith.constant 0 : index
    %c0_50 = arith.constant 0 : index
    %c0_51 = arith.constant 0 : index
    %c0_52 = arith.constant 0 : index
    %84 = vector.load %arg4[%c0_49, %c0_50, %c0_51, %c0_52] : memref<1x4x2x128xf32, #tpu.memory_space<vmem>>, vector<1x1x2x128xf32>
    %85 = vector.shape_cast %84 : vector<1x1x2x128xf32> to vector<2x128xf32>
    %c0_53 = arith.constant 0 : index
    %c1_54 = arith.constant 1 : index
    %c0_55 = arith.constant 0 : index
    %c0_56 = arith.constant 0 : index
    %86 = vector.load %arg4[%c0_53, %c1_54, %c0_55, %c0_56] : memref<1x4x2x128xf32, #tpu.memory_space<vmem>>, vector<1x1x2x128xf32>
    %87 = vector.shape_cast %86 : vector<1x1x2x128xf32> to vector<2x128xf32>
    %c0_57 = arith.constant 0 : index
    %c2_58 = arith.constant 2 : index
    %c0_59 = arith.constant 0 : index
    %c0_60 = arith.constant 0 : index
    %88 = vector.load %arg4[%c0_57, %c2_58, %c0_59, %c0_60] : memref<1x4x2x128xf32, #tpu.memory_space<vmem>>, vector<1x1x2x128xf32>
    %89 = vector.shape_cast %88 : vector<1x1x2x128xf32> to vector<2x128xf32>
    %c0_61 = arith.constant 0 : index
    %c3_62 = arith.constant 3 : index
    %c0_63 = arith.constant 0 : index
    %c0_64 = arith.constant 0 : index
    %90 = vector.load %arg4[%c0_61, %c3_62, %c0_63, %c0_64] : memref<1x4x2x128xf32, #tpu.memory_space<vmem>>, vector<1x1x2x128xf32>
    %91 = vector.shape_cast %90 : vector<1x1x2x128xf32> to vector<2x128xf32>
    %c0_65 = arith.constant 0 : index
    %c0_66 = arith.constant 0 : index
    %92 = memref.load %arg5[%c0_65, %c0_66] : memref<1x72xf32, #tpu.memory_space<smem>>
    %93 = vector.broadcast %92 : f32 to vector<2x128xf32>
    %94 = arith.mulf %93, %69 : vector<2x128xf32>
    %c0_67 = arith.constant 0 : index
    %c4 = arith.constant 4 : index
    %95 = memref.load %arg5[%c0_67, %c4] : memref<1x72xf32, #tpu.memory_space<smem>>
    %96 = vector.broadcast %95 : f32 to vector<2x128xf32>
    %97 = arith.mulf %96, %71 : vector<2x128xf32>
    %98 = arith.addf %94, %97 : vector<2x128xf32>
    %c0_68 = arith.constant 0 : index
    %c8 = arith.constant 8 : index
    %99 = memref.load %arg5[%c0_68, %c8] : memref<1x72xf32, #tpu.memory_space<smem>>
    %100 = vector.broadcast %99 : f32 to vector<2x128xf32>
    %101 = arith.mulf %100, %73 : vector<2x128xf32>
    %102 = arith.addf %98, %101 : vector<2x128xf32>
    %c0_69 = arith.constant 0 : index
    %c12 = arith.constant 12 : index
    %103 = memref.load %arg5[%c0_69, %c12] : memref<1x72xf32, #tpu.memory_space<smem>>
    %104 = vector.broadcast %103 : f32 to vector<2x128xf32>
    %105 = arith.mulf %104, %75 : vector<2x128xf32>
    %106 = arith.addf %102, %105 : vector<2x128xf32>
    %c0_70 = arith.constant 0 : index
    %c16 = arith.constant 16 : index
    %107 = memref.load %arg5[%c0_70, %c16] : memref<1x72xf32, #tpu.memory_space<smem>>
    %108 = vector.broadcast %107 : f32 to vector<2x128xf32>
    %109 = arith.addf %106, %108 : vector<2x128xf32>
    %c0_71 = arith.constant 0 : index
    %c1_72 = arith.constant 1 : index
    %110 = memref.load %arg5[%c0_71, %c1_72] : memref<1x72xf32, #tpu.memory_space<smem>>
    %111 = vector.broadcast %110 : f32 to vector<2x128xf32>
    %112 = arith.mulf %111, %69 : vector<2x128xf32>
    %c0_73 = arith.constant 0 : index
    %c5 = arith.constant 5 : index
    %113 = memref.load %arg5[%c0_73, %c5] : memref<1x72xf32, #tpu.memory_space<smem>>
    %114 = vector.broadcast %113 : f32 to vector<2x128xf32>
    %115 = arith.mulf %114, %71 : vector<2x128xf32>
    %116 = arith.addf %112, %115 : vector<2x128xf32>
    %c0_74 = arith.constant 0 : index
    %c9 = arith.constant 9 : index
    %117 = memref.load %arg5[%c0_74, %c9] : memref<1x72xf32, #tpu.memory_space<smem>>
    %118 = vector.broadcast %117 : f32 to vector<2x128xf32>
    %119 = arith.mulf %118, %73 : vector<2x128xf32>
    %120 = arith.addf %116, %119 : vector<2x128xf32>
    %c0_75 = arith.constant 0 : index
    %c13 = arith.constant 13 : index
    %121 = memref.load %arg5[%c0_75, %c13] : memref<1x72xf32, #tpu.memory_space<smem>>
    %122 = vector.broadcast %121 : f32 to vector<2x128xf32>
    %123 = arith.mulf %122, %75 : vector<2x128xf32>
    %124 = arith.addf %120, %123 : vector<2x128xf32>
    %c0_76 = arith.constant 0 : index
    %c17 = arith.constant 17 : index
    %125 = memref.load %arg5[%c0_76, %c17] : memref<1x72xf32, #tpu.memory_space<smem>>
    %126 = vector.broadcast %125 : f32 to vector<2x128xf32>
    %127 = arith.addf %124, %126 : vector<2x128xf32>
    %c0_77 = arith.constant 0 : index
    %c2_78 = arith.constant 2 : index
    %128 = memref.load %arg5[%c0_77, %c2_78] : memref<1x72xf32, #tpu.memory_space<smem>>
    %129 = vector.broadcast %128 : f32 to vector<2x128xf32>
    %130 = arith.mulf %129, %69 : vector<2x128xf32>
    %c0_79 = arith.constant 0 : index
    %c6 = arith.constant 6 : index
    %131 = memref.load %arg5[%c0_79, %c6] : memref<1x72xf32, #tpu.memory_space<smem>>
    %132 = vector.broadcast %131 : f32 to vector<2x128xf32>
    %133 = arith.mulf %132, %71 : vector<2x128xf32>
    %134 = arith.addf %130, %133 : vector<2x128xf32>
    %c0_80 = arith.constant 0 : index
    %c10 = arith.constant 10 : index
    %135 = memref.load %arg5[%c0_80, %c10] : memref<1x72xf32, #tpu.memory_space<smem>>
    %136 = vector.broadcast %135 : f32 to vector<2x128xf32>
    %137 = arith.mulf %136, %73 : vector<2x128xf32>
    %138 = arith.addf %134, %137 : vector<2x128xf32>
    %c0_81 = arith.constant 0 : index
    %c14 = arith.constant 14 : index
    %139 = memref.load %arg5[%c0_81, %c14] : memref<1x72xf32, #tpu.memory_space<smem>>
    %140 = vector.broadcast %139 : f32 to vector<2x128xf32>
    %141 = arith.mulf %140, %75 : vector<2x128xf32>
    %142 = arith.addf %138, %141 : vector<2x128xf32>
    %c0_82 = arith.constant 0 : index
    %c18 = arith.constant 18 : index
    %143 = memref.load %arg5[%c0_82, %c18] : memref<1x72xf32, #tpu.memory_space<smem>>
    %144 = vector.broadcast %143 : f32 to vector<2x128xf32>
    %145 = arith.addf %142, %144 : vector<2x128xf32>
    %c0_83 = arith.constant 0 : index
    %c3_84 = arith.constant 3 : index
    %146 = memref.load %arg5[%c0_83, %c3_84] : memref<1x72xf32, #tpu.memory_space<smem>>
    %147 = vector.broadcast %146 : f32 to vector<2x128xf32>
    %148 = arith.mulf %147, %69 : vector<2x128xf32>
    %c0_85 = arith.constant 0 : index
    %c7 = arith.constant 7 : index
    %149 = memref.load %arg5[%c0_85, %c7] : memref<1x72xf32, #tpu.memory_space<smem>>
    %150 = vector.broadcast %149 : f32 to vector<2x128xf32>
    %151 = arith.mulf %150, %71 : vector<2x128xf32>
    %152 = arith.addf %148, %151 : vector<2x128xf32>
    %c0_86 = arith.constant 0 : index
    %c11 = arith.constant 11 : index
    %153 = memref.load %arg5[%c0_86, %c11] : memref<1x72xf32, #tpu.memory_space<smem>>
    %154 = vector.broadcast %153 : f32 to vector<2x128xf32>
    %155 = arith.mulf %154, %73 : vector<2x128xf32>
    %156 = arith.addf %152, %155 : vector<2x128xf32>
    %c0_87 = arith.constant 0 : index
    %c15 = arith.constant 15 : index
    %157 = memref.load %arg5[%c0_87, %c15] : memref<1x72xf32, #tpu.memory_space<smem>>
    %158 = vector.broadcast %157 : f32 to vector<2x128xf32>
    %159 = arith.mulf %158, %75 : vector<2x128xf32>
    %160 = arith.addf %156, %159 : vector<2x128xf32>
    %c0_88 = arith.constant 0 : index
    %c19 = arith.constant 19 : index
    %161 = memref.load %arg5[%c0_88, %c19] : memref<1x72xf32, #tpu.memory_space<smem>>
    %162 = vector.broadcast %161 : f32 to vector<2x128xf32>
    %163 = arith.addf %160, %162 : vector<2x128xf32>
    %c0_89 = arith.constant 0 : index
    %c40 = arith.constant 40 : index
    %164 = memref.load %arg5[%c0_89, %c40] : memref<1x72xf32, #tpu.memory_space<smem>>
    %165 = vector.broadcast %164 : f32 to vector<2x128xf32>
    %166 = arith.mulf %165, %109 : vector<2x128xf32>
    %c0_90 = arith.constant 0 : index
    %c44 = arith.constant 44 : index
    %167 = memref.load %arg5[%c0_90, %c44] : memref<1x72xf32, #tpu.memory_space<smem>>
    %168 = vector.broadcast %167 : f32 to vector<2x128xf32>
    %169 = arith.mulf %168, %127 : vector<2x128xf32>
    %170 = arith.addf %166, %169 : vector<2x128xf32>
    %c0_91 = arith.constant 0 : index
    %c48 = arith.constant 48 : index
    %171 = memref.load %arg5[%c0_91, %c48] : memref<1x72xf32, #tpu.memory_space<smem>>
    %172 = vector.broadcast %171 : f32 to vector<2x128xf32>
    %173 = arith.mulf %172, %145 : vector<2x128xf32>
    %174 = arith.addf %170, %173 : vector<2x128xf32>
    %c0_92 = arith.constant 0 : index
    %c52 = arith.constant 52 : index
    %175 = memref.load %arg5[%c0_92, %c52] : memref<1x72xf32, #tpu.memory_space<smem>>
    %176 = vector.broadcast %175 : f32 to vector<2x128xf32>
    %177 = arith.mulf %176, %163 : vector<2x128xf32>
    %178 = arith.addf %174, %177 : vector<2x128xf32>
    %179 = arith.addf %178, %46 : vector<2x128xf32>
    %c0_93 = arith.constant 0 : index
    %c64 = arith.constant 64 : index
    %180 = memref.load %arg5[%c0_93, %c64] : memref<1x72xf32, #tpu.memory_space<smem>>
    %181 = vector.broadcast %180 : f32 to vector<2x128xf32>
    %182 = arith.addf %179, %181 : vector<2x128xf32>
    %c0_94 = arith.constant 0 : index
    %c41 = arith.constant 41 : index
    %183 = memref.load %arg5[%c0_94, %c41] : memref<1x72xf32, #tpu.memory_space<smem>>
    %184 = vector.broadcast %183 : f32 to vector<2x128xf32>
    %185 = arith.mulf %184, %109 : vector<2x128xf32>
    %c0_95 = arith.constant 0 : index
    %c45 = arith.constant 45 : index
    %186 = memref.load %arg5[%c0_95, %c45] : memref<1x72xf32, #tpu.memory_space<smem>>
    %187 = vector.broadcast %186 : f32 to vector<2x128xf32>
    %188 = arith.mulf %187, %127 : vector<2x128xf32>
    %189 = arith.addf %185, %188 : vector<2x128xf32>
    %c0_96 = arith.constant 0 : index
    %c49 = arith.constant 49 : index
    %190 = memref.load %arg5[%c0_96, %c49] : memref<1x72xf32, #tpu.memory_space<smem>>
    %191 = vector.broadcast %190 : f32 to vector<2x128xf32>
    %192 = arith.mulf %191, %145 : vector<2x128xf32>
    %193 = arith.addf %189, %192 : vector<2x128xf32>
    %c0_97 = arith.constant 0 : index
    %c53 = arith.constant 53 : index
    %194 = memref.load %arg5[%c0_97, %c53] : memref<1x72xf32, #tpu.memory_space<smem>>
    %195 = vector.broadcast %194 : f32 to vector<2x128xf32>
    %196 = arith.mulf %195, %163 : vector<2x128xf32>
    %197 = arith.addf %193, %196 : vector<2x128xf32>
    %198 = arith.addf %197, %53 : vector<2x128xf32>
    %c0_98 = arith.constant 0 : index
    %c65 = arith.constant 65 : index
    %199 = memref.load %arg5[%c0_98, %c65] : memref<1x72xf32, #tpu.memory_space<smem>>
    %200 = vector.broadcast %199 : f32 to vector<2x128xf32>
    %201 = arith.addf %198, %200 : vector<2x128xf32>
    %c0_99 = arith.constant 0 : index
    %c42 = arith.constant 42 : index
    %202 = memref.load %arg5[%c0_99, %c42] : memref<1x72xf32, #tpu.memory_space<smem>>
    %203 = vector.broadcast %202 : f32 to vector<2x128xf32>
    %204 = arith.mulf %203, %109 : vector<2x128xf32>
    %c0_100 = arith.constant 0 : index
    %c46 = arith.constant 46 : index
    %205 = memref.load %arg5[%c0_100, %c46] : memref<1x72xf32, #tpu.memory_space<smem>>
    %206 = vector.broadcast %205 : f32 to vector<2x128xf32>
    %207 = arith.mulf %206, %127 : vector<2x128xf32>
    %208 = arith.addf %204, %207 : vector<2x128xf32>
    %c0_101 = arith.constant 0 : index
    %c50 = arith.constant 50 : index
    %209 = memref.load %arg5[%c0_101, %c50] : memref<1x72xf32, #tpu.memory_space<smem>>
    %210 = vector.broadcast %209 : f32 to vector<2x128xf32>
    %211 = arith.mulf %210, %145 : vector<2x128xf32>
    %212 = arith.addf %208, %211 : vector<2x128xf32>
    %c0_102 = arith.constant 0 : index
    %c54 = arith.constant 54 : index
    %213 = memref.load %arg5[%c0_102, %c54] : memref<1x72xf32, #tpu.memory_space<smem>>
    %214 = vector.broadcast %213 : f32 to vector<2x128xf32>
    %215 = arith.mulf %214, %163 : vector<2x128xf32>
    %216 = arith.addf %212, %215 : vector<2x128xf32>
    %217 = arith.addf %216, %60 : vector<2x128xf32>
    %c0_103 = arith.constant 0 : index
    %c66 = arith.constant 66 : index
    %218 = memref.load %arg5[%c0_103, %c66] : memref<1x72xf32, #tpu.memory_space<smem>>
    %219 = vector.broadcast %218 : f32 to vector<2x128xf32>
    %220 = arith.addf %217, %219 : vector<2x128xf32>
    %c0_104 = arith.constant 0 : index
    %c43 = arith.constant 43 : index
    %221 = memref.load %arg5[%c0_104, %c43] : memref<1x72xf32, #tpu.memory_space<smem>>
    %222 = vector.broadcast %221 : f32 to vector<2x128xf32>
    %223 = arith.mulf %222, %109 : vector<2x128xf32>
    %c0_105 = arith.constant 0 : index
    %c47 = arith.constant 47 : index
    %224 = memref.load %arg5[%c0_105, %c47] : memref<1x72xf32, #tpu.memory_space<smem>>
    %225 = vector.broadcast %224 : f32 to vector<2x128xf32>
    %226 = arith.mulf %225, %127 : vector<2x128xf32>
    %227 = arith.addf %223, %226 : vector<2x128xf32>
    %c0_106 = arith.constant 0 : index
    %c51 = arith.constant 51 : index
    %228 = memref.load %arg5[%c0_106, %c51] : memref<1x72xf32, #tpu.memory_space<smem>>
    %229 = vector.broadcast %228 : f32 to vector<2x128xf32>
    %230 = arith.mulf %229, %145 : vector<2x128xf32>
    %231 = arith.addf %227, %230 : vector<2x128xf32>
    %c0_107 = arith.constant 0 : index
    %c55 = arith.constant 55 : index
    %232 = memref.load %arg5[%c0_107, %c55] : memref<1x72xf32, #tpu.memory_space<smem>>
    %233 = vector.broadcast %232 : f32 to vector<2x128xf32>
    %234 = arith.mulf %233, %163 : vector<2x128xf32>
    %235 = arith.addf %231, %234 : vector<2x128xf32>
    %236 = arith.addf %235, %67 : vector<2x128xf32>
    %c0_108 = arith.constant 0 : index
    %c67 = arith.constant 67 : index
    %237 = memref.load %arg5[%c0_108, %c67] : memref<1x72xf32, #tpu.memory_space<smem>>
    %238 = vector.broadcast %237 : f32 to vector<2x128xf32>
    %239 = arith.addf %236, %238 : vector<2x128xf32>
    %240 = arith.subf %77, %182 : vector<2x128xf32>
    %241 = arith.subf %79, %201 : vector<2x128xf32>
    %242 = arith.subf %81, %220 : vector<2x128xf32>
    %243 = arith.subf %83, %239 : vector<2x128xf32>
    %c0_109 = arith.constant 0 : index
    %c20 = arith.constant 20 : index
    %244 = memref.load %arg5[%c0_109, %c20] : memref<1x72xf32, #tpu.memory_space<smem>>
    %245 = vector.broadcast %244 : f32 to vector<2x128xf32>
    %246 = arith.mulf %245, %240 : vector<2x128xf32>
    %c0_110 = arith.constant 0 : index
    %c24 = arith.constant 24 : index
    %247 = memref.load %arg5[%c0_110, %c24] : memref<1x72xf32, #tpu.memory_space<smem>>
    %248 = vector.broadcast %247 : f32 to vector<2x128xf32>
    %249 = arith.mulf %248, %241 : vector<2x128xf32>
    %250 = arith.addf %246, %249 : vector<2x128xf32>
    %c0_111 = arith.constant 0 : index
    %c28 = arith.constant 28 : index
    %251 = memref.load %arg5[%c0_111, %c28] : memref<1x72xf32, #tpu.memory_space<smem>>
    %252 = vector.broadcast %251 : f32 to vector<2x128xf32>
    %253 = arith.mulf %252, %242 : vector<2x128xf32>
    %254 = arith.addf %250, %253 : vector<2x128xf32>
    %c0_112 = arith.constant 0 : index
    %c32 = arith.constant 32 : index
    %255 = memref.load %arg5[%c0_112, %c32] : memref<1x72xf32, #tpu.memory_space<smem>>
    %256 = vector.broadcast %255 : f32 to vector<2x128xf32>
    %257 = arith.mulf %256, %243 : vector<2x128xf32>
    %258 = arith.addf %254, %257 : vector<2x128xf32>
    %c0_113 = arith.constant 0 : index
    %c36 = arith.constant 36 : index
    %259 = memref.load %arg5[%c0_113, %c36] : memref<1x72xf32, #tpu.memory_space<smem>>
    %260 = vector.broadcast %259 : f32 to vector<2x128xf32>
    %261 = arith.addf %258, %260 : vector<2x128xf32>
    %c0_114 = arith.constant 0 : index
    %c21 = arith.constant 21 : index
    %262 = memref.load %arg5[%c0_114, %c21] : memref<1x72xf32, #tpu.memory_space<smem>>
    %263 = vector.broadcast %262 : f32 to vector<2x128xf32>
    %264 = arith.mulf %263, %240 : vector<2x128xf32>
    %c0_115 = arith.constant 0 : index
    %c25 = arith.constant 25 : index
    %265 = memref.load %arg5[%c0_115, %c25] : memref<1x72xf32, #tpu.memory_space<smem>>
    %266 = vector.broadcast %265 : f32 to vector<2x128xf32>
    %267 = arith.mulf %266, %241 : vector<2x128xf32>
    %268 = arith.addf %264, %267 : vector<2x128xf32>
    %c0_116 = arith.constant 0 : index
    %c29 = arith.constant 29 : index
    %269 = memref.load %arg5[%c0_116, %c29] : memref<1x72xf32, #tpu.memory_space<smem>>
    %270 = vector.broadcast %269 : f32 to vector<2x128xf32>
    %271 = arith.mulf %270, %242 : vector<2x128xf32>
    %272 = arith.addf %268, %271 : vector<2x128xf32>
    %c0_117 = arith.constant 0 : index
    %c33 = arith.constant 33 : index
    %273 = memref.load %arg5[%c0_117, %c33] : memref<1x72xf32, #tpu.memory_space<smem>>
    %274 = vector.broadcast %273 : f32 to vector<2x128xf32>
    %275 = arith.mulf %274, %243 : vector<2x128xf32>
    %276 = arith.addf %272, %275 : vector<2x128xf32>
    %c0_118 = arith.constant 0 : index
    %c37 = arith.constant 37 : index
    %277 = memref.load %arg5[%c0_118, %c37] : memref<1x72xf32, #tpu.memory_space<smem>>
    %278 = vector.broadcast %277 : f32 to vector<2x128xf32>
    %279 = arith.addf %276, %278 : vector<2x128xf32>
    %c0_119 = arith.constant 0 : index
    %c22 = arith.constant 22 : index
    %280 = memref.load %arg5[%c0_119, %c22] : memref<1x72xf32, #tpu.memory_space<smem>>
    %281 = vector.broadcast %280 : f32 to vector<2x128xf32>
    %282 = arith.mulf %281, %240 : vector<2x128xf32>
    %c0_120 = arith.constant 0 : index
    %c26 = arith.constant 26 : index
    %283 = memref.load %arg5[%c0_120, %c26] : memref<1x72xf32, #tpu.memory_space<smem>>
    %284 = vector.broadcast %283 : f32 to vector<2x128xf32>
    %285 = arith.mulf %284, %241 : vector<2x128xf32>
    %286 = arith.addf %282, %285 : vector<2x128xf32>
    %c0_121 = arith.constant 0 : index
    %c30 = arith.constant 30 : index
    %287 = memref.load %arg5[%c0_121, %c30] : memref<1x72xf32, #tpu.memory_space<smem>>
    %288 = vector.broadcast %287 : f32 to vector<2x128xf32>
    %289 = arith.mulf %288, %242 : vector<2x128xf32>
    %290 = arith.addf %286, %289 : vector<2x128xf32>
    %c0_122 = arith.constant 0 : index
    %c34 = arith.constant 34 : index
    %291 = memref.load %arg5[%c0_122, %c34] : memref<1x72xf32, #tpu.memory_space<smem>>
    %292 = vector.broadcast %291 : f32 to vector<2x128xf32>
    %293 = arith.mulf %292, %243 : vector<2x128xf32>
    %294 = arith.addf %290, %293 : vector<2x128xf32>
    %c0_123 = arith.constant 0 : index
    %c38 = arith.constant 38 : index
    %295 = memref.load %arg5[%c0_123, %c38] : memref<1x72xf32, #tpu.memory_space<smem>>
    %296 = vector.broadcast %295 : f32 to vector<2x128xf32>
    %297 = arith.addf %294, %296 : vector<2x128xf32>
    %c0_124 = arith.constant 0 : index
    %c23 = arith.constant 23 : index
    %298 = memref.load %arg5[%c0_124, %c23] : memref<1x72xf32, #tpu.memory_space<smem>>
    %299 = vector.broadcast %298 : f32 to vector<2x128xf32>
    %300 = arith.mulf %299, %240 : vector<2x128xf32>
    %c0_125 = arith.constant 0 : index
    %c27 = arith.constant 27 : index
    %301 = memref.load %arg5[%c0_125, %c27] : memref<1x72xf32, #tpu.memory_space<smem>>
    %302 = vector.broadcast %301 : f32 to vector<2x128xf32>
    %303 = arith.mulf %302, %241 : vector<2x128xf32>
    %304 = arith.addf %300, %303 : vector<2x128xf32>
    %c0_126 = arith.constant 0 : index
    %c31 = arith.constant 31 : index
    %305 = memref.load %arg5[%c0_126, %c31] : memref<1x72xf32, #tpu.memory_space<smem>>
    %306 = vector.broadcast %305 : f32 to vector<2x128xf32>
    %307 = arith.mulf %306, %242 : vector<2x128xf32>
    %308 = arith.addf %304, %307 : vector<2x128xf32>
    %c0_127 = arith.constant 0 : index
    %c35 = arith.constant 35 : index
    %309 = memref.load %arg5[%c0_127, %c35] : memref<1x72xf32, #tpu.memory_space<smem>>
    %310 = vector.broadcast %309 : f32 to vector<2x128xf32>
    %311 = arith.mulf %310, %243 : vector<2x128xf32>
    %312 = arith.addf %308, %311 : vector<2x128xf32>
    %c0_128 = arith.constant 0 : index
    %c39 = arith.constant 39 : index
    %313 = memref.load %arg5[%c0_128, %c39] : memref<1x72xf32, #tpu.memory_space<smem>>
    %314 = vector.broadcast %313 : f32 to vector<2x128xf32>
    %315 = arith.addf %312, %314 : vector<2x128xf32>
    %316 = arith.addf %261, %182 : vector<2x128xf32>
    %317 = arith.addf %279, %201 : vector<2x128xf32>
    %318 = arith.addf %297, %220 : vector<2x128xf32>
    %319 = arith.addf %315, %239 : vector<2x128xf32>
    %c0_129 = arith.constant 0 : index
    %c40_130 = arith.constant 40 : index
    %320 = memref.load %arg5[%c0_129, %c40_130] : memref<1x72xf32, #tpu.memory_space<smem>>
    %321 = vector.broadcast %320 : f32 to vector<2x128xf32>
    %322 = arith.mulf %321, %316 : vector<2x128xf32>
    %c0_131 = arith.constant 0 : index
    %c44_132 = arith.constant 44 : index
    %323 = memref.load %arg5[%c0_131, %c44_132] : memref<1x72xf32, #tpu.memory_space<smem>>
    %324 = vector.broadcast %323 : f32 to vector<2x128xf32>
    %325 = arith.mulf %324, %317 : vector<2x128xf32>
    %326 = arith.addf %322, %325 : vector<2x128xf32>
    %c0_133 = arith.constant 0 : index
    %c48_134 = arith.constant 48 : index
    %327 = memref.load %arg5[%c0_133, %c48_134] : memref<1x72xf32, #tpu.memory_space<smem>>
    %328 = vector.broadcast %327 : f32 to vector<2x128xf32>
    %329 = arith.mulf %328, %318 : vector<2x128xf32>
    %330 = arith.addf %326, %329 : vector<2x128xf32>
    %c0_135 = arith.constant 0 : index
    %c52_136 = arith.constant 52 : index
    %331 = memref.load %arg5[%c0_135, %c52_136] : memref<1x72xf32, #tpu.memory_space<smem>>
    %332 = vector.broadcast %331 : f32 to vector<2x128xf32>
    %333 = arith.mulf %332, %319 : vector<2x128xf32>
    %334 = arith.addf %330, %333 : vector<2x128xf32>
    %335 = arith.addf %334, %46 : vector<2x128xf32>
    %c0_137 = arith.constant 0 : index
    %c68 = arith.constant 68 : index
    %336 = memref.load %arg5[%c0_137, %c68] : memref<1x72xf32, #tpu.memory_space<smem>>
    %337 = vector.broadcast %336 : f32 to vector<2x128xf32>
    %338 = arith.addf %335, %337 : vector<2x128xf32>
    %c0_138 = arith.constant 0 : index
    %c41_139 = arith.constant 41 : index
    %339 = memref.load %arg5[%c0_138, %c41_139] : memref<1x72xf32, #tpu.memory_space<smem>>
    %340 = vector.broadcast %339 : f32 to vector<2x128xf32>
    %341 = arith.mulf %340, %316 : vector<2x128xf32>
    %c0_140 = arith.constant 0 : index
    %c45_141 = arith.constant 45 : index
    %342 = memref.load %arg5[%c0_140, %c45_141] : memref<1x72xf32, #tpu.memory_space<smem>>
    %343 = vector.broadcast %342 : f32 to vector<2x128xf32>
    %344 = arith.mulf %343, %317 : vector<2x128xf32>
    %345 = arith.addf %341, %344 : vector<2x128xf32>
    %c0_142 = arith.constant 0 : index
    %c49_143 = arith.constant 49 : index
    %346 = memref.load %arg5[%c0_142, %c49_143] : memref<1x72xf32, #tpu.memory_space<smem>>
    %347 = vector.broadcast %346 : f32 to vector<2x128xf32>
    %348 = arith.mulf %347, %318 : vector<2x128xf32>
    %349 = arith.addf %345, %348 : vector<2x128xf32>
    %c0_144 = arith.constant 0 : index
    %c53_145 = arith.constant 53 : index
    %350 = memref.load %arg5[%c0_144, %c53_145] : memref<1x72xf32, #tpu.memory_space<smem>>
    %351 = vector.broadcast %350 : f32 to vector<2x128xf32>
    %352 = arith.mulf %351, %319 : vector<2x128xf32>
    %353 = arith.addf %349, %352 : vector<2x128xf32>
    %354 = arith.addf %353, %53 : vector<2x128xf32>
    %c0_146 = arith.constant 0 : index
    %c69 = arith.constant 69 : index
    %355 = memref.load %arg5[%c0_146, %c69] : memref<1x72xf32, #tpu.memory_space<smem>>
    %356 = vector.broadcast %355 : f32 to vector<2x128xf32>
    %357 = arith.addf %354, %356 : vector<2x128xf32>
    %c0_147 = arith.constant 0 : index
    %c42_148 = arith.constant 42 : index
    %358 = memref.load %arg5[%c0_147, %c42_148] : memref<1x72xf32, #tpu.memory_space<smem>>
    %359 = vector.broadcast %358 : f32 to vector<2x128xf32>
    %360 = arith.mulf %359, %316 : vector<2x128xf32>
    %c0_149 = arith.constant 0 : index
    %c46_150 = arith.constant 46 : index
    %361 = memref.load %arg5[%c0_149, %c46_150] : memref<1x72xf32, #tpu.memory_space<smem>>
    %362 = vector.broadcast %361 : f32 to vector<2x128xf32>
    %363 = arith.mulf %362, %317 : vector<2x128xf32>
    %364 = arith.addf %360, %363 : vector<2x128xf32>
    %c0_151 = arith.constant 0 : index
    %c50_152 = arith.constant 50 : index
    %365 = memref.load %arg5[%c0_151, %c50_152] : memref<1x72xf32, #tpu.memory_space<smem>>
    %366 = vector.broadcast %365 : f32 to vector<2x128xf32>
    %367 = arith.mulf %366, %318 : vector<2x128xf32>
    %368 = arith.addf %364, %367 : vector<2x128xf32>
    %c0_153 = arith.constant 0 : index
    %c54_154 = arith.constant 54 : index
    %369 = memref.load %arg5[%c0_153, %c54_154] : memref<1x72xf32, #tpu.memory_space<smem>>
    %370 = vector.broadcast %369 : f32 to vector<2x128xf32>
    %371 = arith.mulf %370, %319 : vector<2x128xf32>
    %372 = arith.addf %368, %371 : vector<2x128xf32>
    %373 = arith.addf %372, %60 : vector<2x128xf32>
    %c0_155 = arith.constant 0 : index
    %c70 = arith.constant 70 : index
    %374 = memref.load %arg5[%c0_155, %c70] : memref<1x72xf32, #tpu.memory_space<smem>>
    %375 = vector.broadcast %374 : f32 to vector<2x128xf32>
    %376 = arith.addf %373, %375 : vector<2x128xf32>
    %c0_156 = arith.constant 0 : index
    %c43_157 = arith.constant 43 : index
    %377 = memref.load %arg5[%c0_156, %c43_157] : memref<1x72xf32, #tpu.memory_space<smem>>
    %378 = vector.broadcast %377 : f32 to vector<2x128xf32>
    %379 = arith.mulf %378, %316 : vector<2x128xf32>
    %c0_158 = arith.constant 0 : index
    %c47_159 = arith.constant 47 : index
    %380 = memref.load %arg5[%c0_158, %c47_159] : memref<1x72xf32, #tpu.memory_space<smem>>
    %381 = vector.broadcast %380 : f32 to vector<2x128xf32>
    %382 = arith.mulf %381, %317 : vector<2x128xf32>
    %383 = arith.addf %379, %382 : vector<2x128xf32>
    %c0_160 = arith.constant 0 : index
    %c51_161 = arith.constant 51 : index
    %384 = memref.load %arg5[%c0_160, %c51_161] : memref<1x72xf32, #tpu.memory_space<smem>>
    %385 = vector.broadcast %384 : f32 to vector<2x128xf32>
    %386 = arith.mulf %385, %318 : vector<2x128xf32>
    %387 = arith.addf %383, %386 : vector<2x128xf32>
    %c0_162 = arith.constant 0 : index
    %c55_163 = arith.constant 55 : index
    %388 = memref.load %arg5[%c0_162, %c55_163] : memref<1x72xf32, #tpu.memory_space<smem>>
    %389 = vector.broadcast %388 : f32 to vector<2x128xf32>
    %390 = arith.mulf %389, %319 : vector<2x128xf32>
    %391 = arith.addf %387, %390 : vector<2x128xf32>
    %392 = arith.addf %391, %67 : vector<2x128xf32>
    %c0_164 = arith.constant 0 : index
    %c71 = arith.constant 71 : index
    %393 = memref.load %arg5[%c0_164, %c71] : memref<1x72xf32, #tpu.memory_space<smem>>
    %394 = vector.broadcast %393 : f32 to vector<2x128xf32>
    %395 = arith.addf %392, %394 : vector<2x128xf32>
    %396 = arith.subf %85, %338 : vector<2x128xf32>
    %397 = arith.subf %87, %357 : vector<2x128xf32>
    %398 = arith.subf %89, %376 : vector<2x128xf32>
    %399 = arith.subf %91, %395 : vector<2x128xf32>
    %c0_165 = arith.constant 0 : index
    %c20_166 = arith.constant 20 : index
    %400 = memref.load %arg5[%c0_165, %c20_166] : memref<1x72xf32, #tpu.memory_space<smem>>
    %401 = vector.broadcast %400 : f32 to vector<2x128xf32>
    %402 = arith.mulf %401, %396 : vector<2x128xf32>
    %c0_167 = arith.constant 0 : index
    %c24_168 = arith.constant 24 : index
    %403 = memref.load %arg5[%c0_167, %c24_168] : memref<1x72xf32, #tpu.memory_space<smem>>
    %404 = vector.broadcast %403 : f32 to vector<2x128xf32>
    %405 = arith.mulf %404, %397 : vector<2x128xf32>
    %406 = arith.addf %402, %405 : vector<2x128xf32>
    %c0_169 = arith.constant 0 : index
    %c28_170 = arith.constant 28 : index
    %407 = memref.load %arg5[%c0_169, %c28_170] : memref<1x72xf32, #tpu.memory_space<smem>>
    %408 = vector.broadcast %407 : f32 to vector<2x128xf32>
    %409 = arith.mulf %408, %398 : vector<2x128xf32>
    %410 = arith.addf %406, %409 : vector<2x128xf32>
    %c0_171 = arith.constant 0 : index
    %c32_172 = arith.constant 32 : index
    %411 = memref.load %arg5[%c0_171, %c32_172] : memref<1x72xf32, #tpu.memory_space<smem>>
    %412 = vector.broadcast %411 : f32 to vector<2x128xf32>
    %413 = arith.mulf %412, %399 : vector<2x128xf32>
    %414 = arith.addf %410, %413 : vector<2x128xf32>
    %c0_173 = arith.constant 0 : index
    %c36_174 = arith.constant 36 : index
    %415 = memref.load %arg5[%c0_173, %c36_174] : memref<1x72xf32, #tpu.memory_space<smem>>
    %416 = vector.broadcast %415 : f32 to vector<2x128xf32>
    %417 = arith.addf %414, %416 : vector<2x128xf32>
    %c0_175 = arith.constant 0 : index
    %c21_176 = arith.constant 21 : index
    %418 = memref.load %arg5[%c0_175, %c21_176] : memref<1x72xf32, #tpu.memory_space<smem>>
    %419 = vector.broadcast %418 : f32 to vector<2x128xf32>
    %420 = arith.mulf %419, %396 : vector<2x128xf32>
    %c0_177 = arith.constant 0 : index
    %c25_178 = arith.constant 25 : index
    %421 = memref.load %arg5[%c0_177, %c25_178] : memref<1x72xf32, #tpu.memory_space<smem>>
    %422 = vector.broadcast %421 : f32 to vector<2x128xf32>
    %423 = arith.mulf %422, %397 : vector<2x128xf32>
    %424 = arith.addf %420, %423 : vector<2x128xf32>
    %c0_179 = arith.constant 0 : index
    %c29_180 = arith.constant 29 : index
    %425 = memref.load %arg5[%c0_179, %c29_180] : memref<1x72xf32, #tpu.memory_space<smem>>
    %426 = vector.broadcast %425 : f32 to vector<2x128xf32>
    %427 = arith.mulf %426, %398 : vector<2x128xf32>
    %428 = arith.addf %424, %427 : vector<2x128xf32>
    %c0_181 = arith.constant 0 : index
    %c33_182 = arith.constant 33 : index
    %429 = memref.load %arg5[%c0_181, %c33_182] : memref<1x72xf32, #tpu.memory_space<smem>>
    %430 = vector.broadcast %429 : f32 to vector<2x128xf32>
    %431 = arith.mulf %430, %399 : vector<2x128xf32>
    %432 = arith.addf %428, %431 : vector<2x128xf32>
    %c0_183 = arith.constant 0 : index
    %c37_184 = arith.constant 37 : index
    %433 = memref.load %arg5[%c0_183, %c37_184] : memref<1x72xf32, #tpu.memory_space<smem>>
    %434 = vector.broadcast %433 : f32 to vector<2x128xf32>
    %435 = arith.addf %432, %434 : vector<2x128xf32>
    %c0_185 = arith.constant 0 : index
    %c22_186 = arith.constant 22 : index
    %436 = memref.load %arg5[%c0_185, %c22_186] : memref<1x72xf32, #tpu.memory_space<smem>>
    %437 = vector.broadcast %436 : f32 to vector<2x128xf32>
    %438 = arith.mulf %437, %396 : vector<2x128xf32>
    %c0_187 = arith.constant 0 : index
    %c26_188 = arith.constant 26 : index
    %439 = memref.load %arg5[%c0_187, %c26_188] : memref<1x72xf32, #tpu.memory_space<smem>>
    %440 = vector.broadcast %439 : f32 to vector<2x128xf32>
    %441 = arith.mulf %440, %397 : vector<2x128xf32>
    %442 = arith.addf %438, %441 : vector<2x128xf32>
    %c0_189 = arith.constant 0 : index
    %c30_190 = arith.constant 30 : index
    %443 = memref.load %arg5[%c0_189, %c30_190] : memref<1x72xf32, #tpu.memory_space<smem>>
    %444 = vector.broadcast %443 : f32 to vector<2x128xf32>
    %445 = arith.mulf %444, %398 : vector<2x128xf32>
    %446 = arith.addf %442, %445 : vector<2x128xf32>
    %c0_191 = arith.constant 0 : index
    %c34_192 = arith.constant 34 : index
    %447 = memref.load %arg5[%c0_191, %c34_192] : memref<1x72xf32, #tpu.memory_space<smem>>
    %448 = vector.broadcast %447 : f32 to vector<2x128xf32>
    %449 = arith.mulf %448, %399 : vector<2x128xf32>
    %450 = arith.addf %446, %449 : vector<2x128xf32>
    %c0_193 = arith.constant 0 : index
    %c38_194 = arith.constant 38 : index
    %451 = memref.load %arg5[%c0_193, %c38_194] : memref<1x72xf32, #tpu.memory_space<smem>>
    %452 = vector.broadcast %451 : f32 to vector<2x128xf32>
    %453 = arith.addf %450, %452 : vector<2x128xf32>
    %c0_195 = arith.constant 0 : index
    %c23_196 = arith.constant 23 : index
    %454 = memref.load %arg5[%c0_195, %c23_196] : memref<1x72xf32, #tpu.memory_space<smem>>
    %455 = vector.broadcast %454 : f32 to vector<2x128xf32>
    %456 = arith.mulf %455, %396 : vector<2x128xf32>
    %c0_197 = arith.constant 0 : index
    %c27_198 = arith.constant 27 : index
    %457 = memref.load %arg5[%c0_197, %c27_198] : memref<1x72xf32, #tpu.memory_space<smem>>
    %458 = vector.broadcast %457 : f32 to vector<2x128xf32>
    %459 = arith.mulf %458, %397 : vector<2x128xf32>
    %460 = arith.addf %456, %459 : vector<2x128xf32>
    %c0_199 = arith.constant 0 : index
    %c31_200 = arith.constant 31 : index
    %461 = memref.load %arg5[%c0_199, %c31_200] : memref<1x72xf32, #tpu.memory_space<smem>>
    %462 = vector.broadcast %461 : f32 to vector<2x128xf32>
    %463 = arith.mulf %462, %398 : vector<2x128xf32>
    %464 = arith.addf %460, %463 : vector<2x128xf32>
    %c0_201 = arith.constant 0 : index
    %c35_202 = arith.constant 35 : index
    %465 = memref.load %arg5[%c0_201, %c35_202] : memref<1x72xf32, #tpu.memory_space<smem>>
    %466 = vector.broadcast %465 : f32 to vector<2x128xf32>
    %467 = arith.mulf %466, %399 : vector<2x128xf32>
    %468 = arith.addf %464, %467 : vector<2x128xf32>
    %c0_203 = arith.constant 0 : index
    %c39_204 = arith.constant 39 : index
    %469 = memref.load %arg5[%c0_203, %c39_204] : memref<1x72xf32, #tpu.memory_space<smem>>
    %470 = vector.broadcast %469 : f32 to vector<2x128xf32>
    %471 = arith.addf %468, %470 : vector<2x128xf32>
    %472 = arith.addf %417, %338 : vector<2x128xf32>
    %473 = arith.addf %435, %357 : vector<2x128xf32>
    %474 = arith.addf %453, %376 : vector<2x128xf32>
    %475 = arith.addf %471, %395 : vector<2x128xf32>
    %c0_205 = arith.constant 0 : index
    %c0_206 = arith.constant 0 : index
    %c0_207 = arith.constant 0 : index
    %c0_208 = arith.constant 0 : index
    %476 = vector.load %arg6[%c0_205, %c0_206, %c0_207, %c0_208] : memref<1x4x2x128xf32, #tpu.memory_space<vmem>>, vector<1x1x2x128xf32>
    %477 = vector.shape_cast %476 : vector<1x1x2x128xf32> to vector<2x128xf32>
    %478 = vector.shape_cast %316 : vector<2x128xf32> to vector<1x1x2x128xf32>
    tpu.vector_store %arg6[%c0_205, %c0_206, %c0_207, %c0_208], %478 {strides = array<i32>} : memref<1x4x2x128xf32, #tpu.memory_space<vmem>>, vector<1x1x2x128xf32>,
    %c0_209 = arith.constant 0 : index
    %c1_210 = arith.constant 1 : index
    %c0_211 = arith.constant 0 : index
    %c0_212 = arith.constant 0 : index
    %479 = vector.load %arg6[%c0_209, %c1_210, %c0_211, %c0_212] : memref<1x4x2x128xf32, #tpu.memory_space<vmem>>, vector<1x1x2x128xf32>
    %480 = vector.shape_cast %479 : vector<1x1x2x128xf32> to vector<2x128xf32>
    %481 = vector.shape_cast %317 : vector<2x128xf32> to vector<1x1x2x128xf32>
    tpu.vector_store %arg6[%c0_209, %c1_210, %c0_211, %c0_212], %481 {strides = array<i32>} : memref<1x4x2x128xf32, #tpu.memory_space<vmem>>, vector<1x1x2x128xf32>,
    %c0_213 = arith.constant 0 : index
    %c2_214 = arith.constant 2 : index
    %c0_215 = arith.constant 0 : index
    %c0_216 = arith.constant 0 : index
    %482 = vector.load %arg6[%c0_213, %c2_214, %c0_215, %c0_216] : memref<1x4x2x128xf32, #tpu.memory_space<vmem>>, vector<1x1x2x128xf32>
    %483 = vector.shape_cast %482 : vector<1x1x2x128xf32> to vector<2x128xf32>
    %484 = vector.shape_cast %318 : vector<2x128xf32> to vector<1x1x2x128xf32>
    tpu.vector_store %arg6[%c0_213, %c2_214, %c0_215, %c0_216], %484 {strides = array<i32>} : memref<1x4x2x128xf32, #tpu.memory_space<vmem>>, vector<1x1x2x128xf32>,
    %c0_217 = arith.constant 0 : index
    %c3_218 = arith.constant 3 : index
    %c0_219 = arith.constant 0 : index
    %c0_220 = arith.constant 0 : index
    %485 = vector.load %arg6[%c0_217, %c3_218, %c0_219, %c0_220] : memref<1x4x2x128xf32, #tpu.memory_space<vmem>>, vector<1x1x2x128xf32>
    %486 = vector.shape_cast %485 : vector<1x1x2x128xf32> to vector<2x128xf32>
    %487 = vector.shape_cast %319 : vector<2x128xf32> to vector<1x1x2x128xf32>
    tpu.vector_store %arg6[%c0_217, %c3_218, %c0_219, %c0_220], %487 {strides = array<i32>} : memref<1x4x2x128xf32, #tpu.memory_space<vmem>>, vector<1x1x2x128xf32>,
    %c0_221 = arith.constant 0 : index
    %c0_222 = arith.constant 0 : index
    %c0_223 = arith.constant 0 : index
    %c0_224 = arith.constant 0 : index
    %488 = vector.load %arg7[%c0_221, %c0_222, %c0_223, %c0_224] : memref<1x4x2x128xf32, #tpu.memory_space<vmem>>, vector<1x1x2x128xf32>
    %489 = vector.shape_cast %488 : vector<1x1x2x128xf32> to vector<2x128xf32>
    %490 = vector.shape_cast %472 : vector<2x128xf32> to vector<1x1x2x128xf32>
    tpu.vector_store %arg7[%c0_221, %c0_222, %c0_223, %c0_224], %490 {strides = array<i32>} : memref<1x4x2x128xf32, #tpu.memory_space<vmem>>, vector<1x1x2x128xf32>,
    %c0_225 = arith.constant 0 : index
    %c1_226 = arith.constant 1 : index
    %c0_227 = arith.constant 0 : index
    %c0_228 = arith.constant 0 : index
    %491 = vector.load %arg7[%c0_225, %c1_226, %c0_227, %c0_228] : memref<1x4x2x128xf32, #tpu.memory_space<vmem>>, vector<1x1x2x128xf32>
    %492 = vector.shape_cast %491 : vector<1x1x2x128xf32> to vector<2x128xf32>
    %493 = vector.shape_cast %473 : vector<2x128xf32> to vector<1x1x2x128xf32>
    tpu.vector_store %arg7[%c0_225, %c1_226, %c0_227, %c0_228], %493 {strides = array<i32>} : memref<1x4x2x128xf32, #tpu.memory_space<vmem>>, vector<1x1x2x128xf32>,
    %c0_229 = arith.constant 0 : index
    %c2_230 = arith.constant 2 : index
    %c0_231 = arith.constant 0 : index
    %c0_232 = arith.constant 0 : index
    %494 = vector.load %arg7[%c0_229, %c2_230, %c0_231, %c0_232] : memref<1x4x2x128xf32, #tpu.memory_space<vmem>>, vector<1x1x2x128xf32>
    %495 = vector.shape_cast %494 : vector<1x1x2x128xf32> to vector<2x128xf32>
    %496 = vector.shape_cast %474 : vector<2x128xf32> to vector<1x1x2x128xf32>
    tpu.vector_store %arg7[%c0_229, %c2_230, %c0_231, %c0_232], %496 {strides = array<i32>} : memref<1x4x2x128xf32, #tpu.memory_space<vmem>>, vector<1x1x2x128xf32>,
    %c0_233 = arith.constant 0 : index
    %c3_234 = arith.constant 3 : index
    %c0_235 = arith.constant 0 : index
    %c0_236 = arith.constant 0 : index
    %497 = vector.load %arg7[%c0_233, %c3_234, %c0_235, %c0_236] : memref<1x4x2x128xf32, #tpu.memory_space<vmem>>, vector<1x1x2x128xf32>
    %498 = vector.shape_cast %497 : vector<1x1x2x128xf32> to vector<2x128xf32>
    %499 = vector.shape_cast %475 : vector<2x128xf32> to vector<1x1x2x128xf32>
    tpu.vector_store %arg7[%c0_233, %c3_234, %c0_235, %c0_236], %499 {strides = array<i32>} : memref<1x4x2x128xf32, #tpu.memory_space<vmem>>, vector<1x1x2x128xf32>,
    %c0_237 = arith.constant 0 : index
    %c0_238 = arith.constant 0 : index
    %c0_239 = arith.constant 0 : index
    %c0_240 = arith.constant 0 : index
    %500 = vector.load %arg8[%c0_237, %c0_238, %c0_239, %c0_240] : memref<1x4x2x128xf32, #tpu.memory_space<vmem>>, vector<1x1x2x128xf32>
    %501 = vector.shape_cast %500 : vector<1x1x2x128xf32> to vector<2x128xf32>
    %502 = vector.shape_cast %261 : vector<2x128xf32> to vector<1x1x2x128xf32>
    tpu.vector_store %arg8[%c0_237, %c0_238, %c0_239, %c0_240], %502 {strides = array<i32>} : memref<1x4x2x128xf32, #tpu.memory_space<vmem>>, vector<1x1x2x128xf32>,
    %c0_241 = arith.constant 0 : index
    %c1_242 = arith.constant 1 : index
    %c0_243 = arith.constant 0 : index
    %c0_244 = arith.constant 0 : index
    %503 = vector.load %arg8[%c0_241, %c1_242, %c0_243, %c0_244] : memref<1x4x2x128xf32, #tpu.memory_space<vmem>>, vector<1x1x2x128xf32>
    %504 = vector.shape_cast %503 : vector<1x1x2x128xf32> to vector<2x128xf32>
    %505 = vector.shape_cast %279 : vector<2x128xf32> to vector<1x1x2x128xf32>
    tpu.vector_store %arg8[%c0_241, %c1_242, %c0_243, %c0_244], %505 {strides = array<i32>} : memref<1x4x2x128xf32, #tpu.memory_space<vmem>>, vector<1x1x2x128xf32>,
    %c0_245 = arith.constant 0 : index
    %c2_246 = arith.constant 2 : index
    %c0_247 = arith.constant 0 : index
    %c0_248 = arith.constant 0 : index
    %506 = vector.load %arg8[%c0_245, %c2_246, %c0_247, %c0_248] : memref<1x4x2x128xf32, #tpu.memory_space<vmem>>, vector<1x1x2x128xf32>
    %507 = vector.shape_cast %506 : vector<1x1x2x128xf32> to vector<2x128xf32>
    %508 = vector.shape_cast %297 : vector<2x128xf32> to vector<1x1x2x128xf32>
    tpu.vector_store %arg8[%c0_245, %c2_246, %c0_247, %c0_248], %508 {strides = array<i32>} : memref<1x4x2x128xf32, #tpu.memory_space<vmem>>, vector<1x1x2x128xf32>,
    %c0_249 = arith.constant 0 : index
    %c3_250 = arith.constant 3 : index
    %c0_251 = arith.constant 0 : index
    %c0_252 = arith.constant 0 : index
    %509 = vector.load %arg8[%c0_249, %c3_250, %c0_251, %c0_252] : memref<1x4x2x128xf32, #tpu.memory_space<vmem>>, vector<1x1x2x128xf32>
    %510 = vector.shape_cast %509 : vector<1x1x2x128xf32> to vector<2x128xf32>
    %511 = vector.shape_cast %315 : vector<2x128xf32> to vector<1x1x2x128xf32>
    tpu.vector_store %arg8[%c0_249, %c3_250, %c0_251, %c0_252], %511 {strides = array<i32>} : memref<1x4x2x128xf32, #tpu.memory_space<vmem>>, vector<1x1x2x128xf32>,
    %c0_253 = arith.constant 0 : index
    %c0_254 = arith.constant 0 : index
    %c0_255 = arith.constant 0 : index
    %c0_256 = arith.constant 0 : index
    %512 = vector.load %arg9[%c0_253, %c0_254, %c0_255, %c0_256] : memref<1x4x2x128xf32, #tpu.memory_space<vmem>>, vector<1x1x2x128xf32>
    %513 = vector.shape_cast %512 : vector<1x1x2x128xf32> to vector<2x128xf32>
    %514 = vector.shape_cast %417 : vector<2x128xf32> to vector<1x1x2x128xf32>
    tpu.vector_store %arg9[%c0_253, %c0_254, %c0_255, %c0_256], %514 {strides = array<i32>} : memref<1x4x2x128xf32, #tpu.memory_space<vmem>>, vector<1x1x2x128xf32>,
    %c0_257 = arith.constant 0 : index
    %c1_258 = arith.constant 1 : index
    %c0_259 = arith.constant 0 : index
    %c0_260 = arith.constant 0 : index
    %515 = vector.load %arg9[%c0_257, %c1_258, %c0_259, %c0_260] : memref<1x4x2x128xf32, #tpu.memory_space<vmem>>, vector<1x1x2x128xf32>
    %516 = vector.shape_cast %515 : vector<1x1x2x128xf32> to vector<2x128xf32>
    %517 = vector.shape_cast %435 : vector<2x128xf32> to vector<1x1x2x128xf32>
    tpu.vector_store %arg9[%c0_257, %c1_258, %c0_259, %c0_260], %517 {strides = array<i32>} : memref<1x4x2x128xf32, #tpu.memory_space<vmem>>, vector<1x1x2x128xf32>,
    %c0_261 = arith.constant 0 : index
    %c2_262 = arith.constant 2 : index
    %c0_263 = arith.constant 0 : index
    %c0_264 = arith.constant 0 : index
    %518 = vector.load %arg9[%c0_261, %c2_262, %c0_263, %c0_264] : memref<1x4x2x128xf32, #tpu.memory_space<vmem>>, vector<1x1x2x128xf32>
    %519 = vector.shape_cast %518 : vector<1x1x2x128xf32> to vector<2x128xf32>
    %520 = vector.shape_cast %453 : vector<2x128xf32> to vector<1x1x2x128xf32>
    tpu.vector_store %arg9[%c0_261, %c2_262, %c0_263, %c0_264], %520 {strides = array<i32>} : memref<1x4x2x128xf32, #tpu.memory_space<vmem>>, vector<1x1x2x128xf32>,
    %c0_265 = arith.constant 0 : index
    %c3_266 = arith.constant 3 : index
    %c0_267 = arith.constant 0 : index
    %c0_268 = arith.constant 0 : index
    %521 = vector.load %arg9[%c0_265, %c3_266, %c0_267, %c0_268] : memref<1x4x2x128xf32, #tpu.memory_space<vmem>>, vector<1x1x2x128xf32>
    %522 = vector.shape_cast %521 : vector<1x1x2x128xf32> to vector<2x128xf32>
    %523 = vector.shape_cast %471 : vector<2x128xf32> to vector<1x1x2x128xf32>
    tpu.vector_store %arg9[%c0_265, %c3_266, %c0_267, %c0_268], %523 {strides = array<i32>} : memref<1x4x2x128xf32, #tpu.memory_space<vmem>>, vector<1x1x2x128xf32>,
    %c0_269 = arith.constant 0 : index
    %c0_270 = arith.constant 0 : index
    %c0_271 = arith.constant 0 : index
    %c0_272 = arith.constant 0 : index
    %524 = vector.load %arg10[%c0_269, %c0_270, %c0_271, %c0_272] : memref<1x4x2x128xf32, #tpu.memory_space<vmem>>, vector<1x1x2x128xf32>
    %525 = vector.shape_cast %524 : vector<1x1x2x128xf32> to vector<2x128xf32>
    %526 = vector.shape_cast %240 : vector<2x128xf32> to vector<1x1x2x128xf32>
    tpu.vector_store %arg10[%c0_269, %c0_270, %c0_271, %c0_272], %526 {strides = array<i32>} : memref<1x4x2x128xf32, #tpu.memory_space<vmem>>, vector<1x1x2x128xf32>,
    %c0_273 = arith.constant 0 : index
    %c1_274 = arith.constant 1 : index
    %c0_275 = arith.constant 0 : index
    %c0_276 = arith.constant 0 : index
    %527 = vector.load %arg10[%c0_273, %c1_274, %c0_275, %c0_276] : memref<1x4x2x128xf32, #tpu.memory_space<vmem>>, vector<1x1x2x128xf32>
    %528 = vector.shape_cast %527 : vector<1x1x2x128xf32> to vector<2x128xf32>
    %529 = vector.shape_cast %241 : vector<2x128xf32> to vector<1x1x2x128xf32>
    tpu.vector_store %arg10[%c0_273, %c1_274, %c0_275, %c0_276], %529 {strides = array<i32>} : memref<1x4x2x128xf32, #tpu.memory_space<vmem>>, vector<1x1x2x128xf32>,
    %c0_277 = arith.constant 0 : index
    %c2_278 = arith.constant 2 : index
    %c0_279 = arith.constant 0 : index
    %c0_280 = arith.constant 0 : index
    %530 = vector.load %arg10[%c0_277, %c2_278, %c0_279, %c0_280] : memref<1x4x2x128xf32, #tpu.memory_space<vmem>>, vector<1x1x2x128xf32>
    %531 = vector.shape_cast %530 : vector<1x1x2x128xf32> to vector<2x128xf32>
    %532 = vector.shape_cast %242 : vector<2x128xf32> to vector<1x1x2x128xf32>
    tpu.vector_store %arg10[%c0_277, %c2_278, %c0_279, %c0_280], %532 {strides = array<i32>} : memref<1x4x2x128xf32, #tpu.memory_space<vmem>>, vector<1x1x2x128xf32>,
    %c0_281 = arith.constant 0 : index
    %c3_282 = arith.constant 3 : index
    %c0_283 = arith.constant 0 : index
    %c0_284 = arith.constant 0 : index
    %533 = vector.load %arg10[%c0_281, %c3_282, %c0_283, %c0_284] : memref<1x4x2x128xf32, #tpu.memory_space<vmem>>, vector<1x1x2x128xf32>
    %534 = vector.shape_cast %533 : vector<1x1x2x128xf32> to vector<2x128xf32>
    %535 = vector.shape_cast %243 : vector<2x128xf32> to vector<1x1x2x128xf32>
    tpu.vector_store %arg10[%c0_281, %c3_282, %c0_283, %c0_284], %535 {strides = array<i32>} : memref<1x4x2x128xf32, #tpu.memory_space<vmem>>, vector<1x1x2x128xf32>,
    %c0_285 = arith.constant 0 : index
    %c0_286 = arith.constant 0 : index
    %c0_287 = arith.constant 0 : index
    %c0_288 = arith.constant 0 : index
    %536 = vector.load %arg11[%c0_285, %c0_286, %c0_287, %c0_288] : memref<1x4x2x128xf32, #tpu.memory_space<vmem>>, vector<1x1x2x128xf32>
    %537 = vector.shape_cast %536 : vector<1x1x2x128xf32> to vector<2x128xf32>
    %538 = vector.shape_cast %396 : vector<2x128xf32> to vector<1x1x2x128xf32>
    tpu.vector_store %arg11[%c0_285, %c0_286, %c0_287, %c0_288], %538 {strides = array<i32>} : memref<1x4x2x128xf32, #tpu.memory_space<vmem>>, vector<1x1x2x128xf32>,
    %c0_289 = arith.constant 0 : index
    %c1_290 = arith.constant 1 : index
    %c0_291 = arith.constant 0 : index
    %c0_292 = arith.constant 0 : index
    %539 = vector.load %arg11[%c0_289, %c1_290, %c0_291, %c0_292] : memref<1x4x2x128xf32, #tpu.memory_space<vmem>>, vector<1x1x2x128xf32>
    %540 = vector.shape_cast %539 : vector<1x1x2x128xf32> to vector<2x128xf32>
    %541 = vector.shape_cast %397 : vector<2x128xf32> to vector<1x1x2x128xf32>
    tpu.vector_store %arg11[%c0_289, %c1_290, %c0_291, %c0_292], %541 {strides = array<i32>} : memref<1x4x2x128xf32, #tpu.memory_space<vmem>>, vector<1x1x2x128xf32>,
    %c0_293 = arith.constant 0 : index
    %c2_294 = arith.constant 2 : index
    %c0_295 = arith.constant 0 : index
    %c0_296 = arith.constant 0 : index
    %542 = vector.load %arg11[%c0_293, %c2_294, %c0_295, %c0_296] : memref<1x4x2x128xf32, #tpu.memory_space<vmem>>, vector<1x1x2x128xf32>
    %543 = vector.shape_cast %542 : vector<1x1x2x128xf32> to vector<2x128xf32>
    %544 = vector.shape_cast %398 : vector<2x128xf32> to vector<1x1x2x128xf32>
    tpu.vector_store %arg11[%c0_293, %c2_294, %c0_295, %c0_296], %544 {strides = array<i32>} : memref<1x4x2x128xf32, #tpu.memory_space<vmem>>, vector<1x1x2x128xf32>,
    %c0_297 = arith.constant 0 : index
    %c3_298 = arith.constant 3 : index
    %c0_299 = arith.constant 0 : index
    %c0_300 = arith.constant 0 : index
    %545 = vector.load %arg11[%c0_297, %c3_298, %c0_299, %c0_300] : memref<1x4x2x128xf32, #tpu.memory_space<vmem>>, vector<1x1x2x128xf32>
    %546 = vector.shape_cast %545 : vector<1x1x2x128xf32> to vector<2x128xf32>
    %547 = vector.shape_cast %399 : vector<2x128xf32> to vector<1x1x2x128xf32>
    tpu.vector_store %arg11[%c0_297, %c3_298, %c0_299, %c0_300], %547 {strides = array<i32>} : memref<1x4x2x128xf32, #tpu.memory_space<vmem>>, vector<1x1x2x128xf32>,
    return
  }
  func.func @transform_0(%arg0: i32, %arg1: i32) -> (i32, i32, i32, i32) {
    %c0_i32 = arith.constant 0 : i32
    %c0_i32_0 = arith.constant 0 : i32
    %c0_i32_1 = arith.constant 0 : i32
    return %arg0, %c0_i32, %arg1, %c0_i32_0 : i32, i32, i32, i32
  }
  func.func @transform_1(%arg0: i32, %arg1: i32) -> (i32, i32, i32, i32) {
    %c0_i32 = arith.constant 0 : i32
    %c0_i32_0 = arith.constant 0 : i32
    %c0_i32_1 = arith.constant 0 : i32
    return %arg0, %c0_i32, %arg1, %c0_i32_0 : i32, i32, i32, i32
  }
  func.func @transform_2(%arg0: i32, %arg1: i32) -> (i32, i32, i32, i32) {
    %c0_i32 = arith.constant 0 : i32
    %c0_i32_0 = arith.constant 0 : i32
    %c0_i32_1 = arith.constant 0 : i32
    return %arg0, %c0_i32, %arg1, %c0_i32_0 : i32, i32, i32, i32
  }
  func.func @transform_3(%arg0: i32, %arg1: i32) -> (i32, i32) {
    %c0_i32 = arith.constant 0 : i32
    %c0_i32_0 = arith.constant 0 : i32
    %c0_i32_1 = arith.constant 0 : i32
    return %c0_i32, %c0_i32_0 : i32, i32
  }
  func.func @transform_4(%arg0: i32, %arg1: i32) -> (i32, i32, i32, i32) {
    %c0_i32 = arith.constant 0 : i32
    %c0_i32_0 = arith.constant 0 : i32
    %c0_i32_1 = arith.constant 0 : i32
    return %arg0, %c0_i32, %arg1, %c0_i32_0 : i32, i32, i32, i32
  }
  func.func @transform_5(%arg0: i32, %arg1: i32) -> (i32, i32, i32, i32) {
    %c0_i32 = arith.constant 0 : i32
    %c0_i32_0 = arith.constant 0 : i32
    %c0_i32_1 = arith.constant 0 : i32
    return %arg0, %c0_i32, %arg1, %c0_i32_0 : i32, i32, i32, i32
  }
  func.func @transform_6(%arg0: i32, %arg1: i32) -> (i32, i32, i32, i32) {
    %c0_i32 = arith.constant 0 : i32
    %c0_i32_0 = arith.constant 0 : i32
    %c0_i32_1 = arith.constant 0 : i32
    return %arg0, %c0_i32, %arg1, %c0_i32_0 : i32, i32, i32, i32
  }
  func.func @transform_7(%arg0: i32, %arg1: i32) -> (i32, i32, i32, i32) {
    %c0_i32 = arith.constant 0 : i32
    %c0_i32_0 = arith.constant 0 : i32
    %c0_i32_1 = arith.constant 0 : i32
    return %arg0, %c0_i32, %arg1, %c0_i32_0 : i32, i32, i32, i32
  }
  func.func @transform_8(%arg0: i32, %arg1: i32) -> (i32, i32, i32, i32) {
    %c0_i32 = arith.constant 0 : i32
    %c0_i32_0 = arith.constant 0 : i32
    %c0_i32_1 = arith.constant 0 : i32
    return %arg0, %c0_i32, %arg1, %c0_i32_0 : i32, i32, i32, i32
  }
  func.func @transform_9(%arg0: i32, %arg1: i32) -> (i32, i32, i32, i32) {
    %c0_i32 = arith.constant 0 : i32
    %c0_i32_0 = arith.constant 0 : i32
    %c0_i32_1 = arith.constant 0 : i32
    return %arg0, %c0_i32, %arg1, %c0_i32_0 : i32, i32, i32, i32
  }
}

</mosaic_0001>

<llo_original>
// kernel: tpu_custom_call.1
$region0: #{tpu_custom_call.1}
  #allocation0 [shape = 'u32[]', space=smem, size = 0x4, offset = 0x4, fixed_abs, tag = 'smem constant byte address 0x4 - core index']
  #allocation1 [shape = 'u32[72,128]{1,0:T(1,128)}', space=vmem, size = 0x9000, scoped, tag = 'internal scratch']
  %s0 = inlined_call_operand.hbm [shape: f32[2,4,2,128], index: 0, kind: input, shape index: {}]
  %s1 = inlined_call_operand.hbm [shape: f32[2,4,2,128], index: 1, kind: input, shape index: {}]
  %s2 = inlined_call_operand.hbm [shape: f32[2,4,2,128], index: 2, kind: input, shape index: {}]
  %s3 = inlined_call_operand.vmem [shape: f32[1,72], index: 3, kind: input, shape index: {}]
  %s4 = inlined_call_operand.hbm [shape: f32[2,4,2,128], index: 4, kind: output, shape index: {0}]
  %s5 = inlined_call_operand.hbm [shape: f32[2,4,2,128], index: 5, kind: output, shape index: {1}]
  %s6 = inlined_call_operand.hbm [shape: f32[2,4,2,128], index: 6, kind: output, shape index: {2}]
  %s7 = inlined_call_operand.hbm [shape: f32[2,4,2,128], index: 7, kind: output, shape index: {3}]
  %s8 = inlined_call_operand.hbm [shape: f32[2,4,2,128], index: 8, kind: output, shape index: {4}]
  %s9 = inlined_call_operand.hbm [shape: f32[2,4,2,128], index: 9, kind: output, shape index: {5}]
  %10 = xla_tuple %s4, %s5, %s6, %s7, %s8, %s9
  %s11 = sld [smem:[#allocation0]]
  $region105: #{tpu_custom_call.1} parent=0
    _
  %s13 = ssub.s32 1, %s11
  %s14 = scalar_select 0, %s13, %s11
  $region1: #{tpu_custom_call.1} parent=0
    #allocation2 [shape = 'u8[8192]{0}', space=vmem, size = 0x2000, scoped, tag = 'input window, operand 0']
    #allocation3 [shape = 's32[2]{0}', space=sflag, size = 0x8, scoped, tag = 'scoped memory for tpu_custom_call.1']
    #allocation4 [shape = 's32[2]{0}', space=sflag, size = 0x8, scoped, tag = 'scoped memory for tpu_custom_call.1']
    #allocation5 [shape = 's32[2]{0}', space=sflag, size = 0x8, scoped, tag = 'scoped memory for tpu_custom_call.1']
    #allocation6 [shape = 'u8[8192]{0}', space=vmem, size = 0x2000, scoped, tag = 'input window, operand 1']
    #allocation7 [shape = 's32[2]{0}', space=sflag, size = 0x8, scoped, tag = 'scoped memory for tpu_custom_call.1']
    #allocation8 [shape = 'u8[8192]{0}', space=vmem, size = 0x2000, scoped, tag = 'input window, operand 2']
    #allocation9 [shape = 'u8[512]{0}', space=smem, size = 0x200, scoped, tag = 'input window, operand 3, single buffered']
    #allocation10 [shape = 'u8[8192]{0}', space=vmem, size = 0x2000, scoped, tag = 'output window, operand 0']
    #allocation11 [shape = 'u8[8192]{0}', space=vmem, size = 0x2000, scoped, tag = 'output window, operand 1']
    #allocation12 [shape = 's32[2]{0}', space=sflag, size = 0x8, scoped, tag = 'scoped memory for tpu_custom_call.1']
    #allocation13 [shape = 'u8[8192]{0}', space=vmem, size = 0x2000, scoped, tag = 'output window, operand 2']
    #allocation14 [shape = 'u8[8192]{0}', space=vmem, size = 0x2000, scoped, tag = 'output window, operand 3']
    #allocation15 [shape = 's32[2]{0}', space=sflag, size = 0x8, scoped, tag = 'scoped memory for tpu_custom_call.1']
    #allocation16 [shape = 'u8[8192]{0}', space=vmem, size = 0x2000, scoped, tag = 'output window, operand 4']
    #allocation17 [shape = 'u8[8192]{0}', space=vmem, size = 0x2000, scoped, tag = 'output window, operand 5']
    #allocation18 [shape = 's32[2]{0}', space=sflag, size = 0x8, scoped, tag = 'scoped memory for tpu_custom_call.1']
    %15 = vsyncpa [#allocation3], 0
    %s16 = scalar_lea.sflag [#allocation3], 1
    %17 = vsyncpa %s16, 0
    %18 = vsyncpa [#allocation7], 0
    %s19 = scalar_lea.sflag [#allocation7], 1
    %20 = vsyncpa %s19, 0
    %21 = vsyncpa [#allocation5], 0
    %22 = vsyncpa [#allocation4], 0
    %s23 = scalar_lea.sflag [#allocation4], 1
    %24 = vsyncpa %s23, 0
    %25 = vsyncpa [#allocation12], 0
    %s26 = scalar_lea.sflag [#allocation12], 1
    %27 = vsyncpa %s26, 0
    %28 = vsyncpa [#allocation15], 0
    %s29 = scalar_lea.sflag [#allocation15], 1
    %30 = vsyncpa %s29, 0
    %31 = vsyncpa [#allocation18], 0
    %s32 = scalar_lea.sflag [#allocation18], 1
    %33 = vsyncpa %s32, 0
    loop: start=0, step=1, limit=4
    $region2: #{tpu_custom_call.1} parent=1 // loop_pre_header
      _
    $region3: #{tpu_custom_call.1} parent=1 // loop_header
      %s35 = sphi 0, %s39
      %p36 = scmp.ge.s32.totalorder %s35, 4
      %s42 = sphi 0, %s54
      %s43 = sphi 0, %s50
      %s44 = sphi 0, %s42
      %s45 = sphi 0, %s43
      %s46 = sphi 0, %s44
      %s47 = sphi 0, %s45
      %s59 = sphi 0, %s61
      %s62 = sphi 0, %s59
      %s63 = sphi 0, %s62
      %s79 = sphi 0, %s63
      %s87 = sphi 0, %s89
      %s90 = sphi 0, %s87
      %s91 = sphi 0, %s90
      %s107 = sphi 0, %s91
      %s115 = sphi 0, %s117
      %s118 = sphi 0, %s115
      %s119 = sphi 0, %s118
      %s135 = sphi 0, %s119
      %s139 = sphi 0, %s139
      %s141 = sphi 0, %s139
      %s142 = sphi 0, %s141
      %s156 = sphi 0, %s142
      %s164 = sphi 0, %s166
      %s167 = sphi 0, %s164
      %s168 = sphi 0, %s167
      %s184 = sphi 0, %s168
      %s192 = sphi 0, %s194
      %s195 = sphi 0, %s192
      %s196 = sphi 0, %s195
      %s212 = sphi 0, %s196
      %s220 = sphi 0, %s222
      %s223 = sphi 0, %s220
      %s224 = sphi 0, %s223
      %s240 = sphi 0, %s224
      %s248 = sphi 0, %s250
      %s251 = sphi 0, %s248
      %s252 = sphi 0, %s251
      %s268 = sphi 0, %s252
      %s276 = sphi 0, %s278
      %s279 = sphi 0, %s276
      %s280 = sphi 0, %s279
      %s296 = sphi 0, %s280
      %s304 = sphi 0, %s306
      %s307 = sphi 0, %s304
      %s308 = sphi 0, %s307
      %s324 = sphi 0, %s308
    $region4: #{tpu_custom_call.1} parent=1 // loop_header_branch
      %38 = sbr.rel (%p36) target = $region8
    $region5: #{tpu_custom_call.1} parent=1 // loop_body
      %s40 = ssub.s32 %s35, 1
      %s41 = ssub.s32 %s35, 2
      %s48 = sadd.s32 1, %s43
      %p49 = scmp.ge.s32.totalorder %s48, 1
      %s50 = scalar_select %p49, 0, %s48
      %s51 = sadd.s32 1, %s42
      %s52 = scalar_select %p49, %s51, %s42
      %p53 = scmp.ge.s32.totalorder %s52, 2
      %s54 = scalar_select %p53, 0, %s52
      %s55 = ssub.s32 %s42, %s54
      %s56 = ssub.s32 %s43, %s50
      %s57 = sor.u32 %s55, %s56
      %p58 = scmp.eq.s32.totalorder %s57, 0
      %s60 = sadd.s32 %s59, 1
      %s61 = scalar_select %p58, %s59, %s60
      %p64 = pneg %p58
      %p65 = scmp.eq.s32.totalorder %s35, 1
      %p66 = por %p64, %p65
      %p67 = scmp.ne.s32.totalorder %s59, %s62
      %p68 = scmp.eq.s32.totalorder %s35, 0
      %p69 = por %p67, %p68
      %p70 = scmp.ne.s32.totalorder %s59, %s62
      %p71 = scmp.eq.s32.totalorder %s40, 1
      %p72 = por %p70, %p71
      %p73 = scmp.ne.s32.totalorder %s62, %s63
      %p74 = scmp.eq.s32.totalorder %s40, 0
      %p75 = por %p73, %p74
      %p76 = scmp.ne.s32.totalorder %s62, %s63
      %p77 = scmp.eq.s32.totalorder %s41, 1
      %p78 = por %p76, %p77
      %p80 = scmp.ne.s32.totalorder %s63, %s79
      %p81 = scmp.eq.s32.totalorder %s41, 0
      %p82 = por %p80, %p81
      %s83 = ssub.s32 %s42, %s54
      %s84 = ssub.s32 %s43, %s50
      %s85 = sor.u32 %s83, %s84
      %p86 = scmp.eq.s32.totalorder %s85, 0
      %s88 = sadd.s32 %s87, 1
      %s89 = scalar_select %p86, %s87, %s88
      %p92 = pneg %p86
      %p93 = scmp.eq.s32.totalorder %s35, 1
      %p94 = por %p92, %p93
      %p95 = scmp.ne.s32.totalorder %s87, %s90
      %p96 = scmp.eq.s32.totalorder %s35, 0
      %p97 = por %p95, %p96
      %p98 = scmp.ne.s32.totalorder %s87, %s90
      %p99 = scmp.eq.s32.totalorder %s40, 1
      %p100 = por %p98, %p99
      %p101 = scmp.ne.s32.totalorder %s90, %s91
      %p102 = scmp.eq.s32.totalorder %s40, 0
      %p103 = por %p101, %p102
      %p104 = scmp.ne.s32.totalorder %s90, %s91
      %p105 = scmp.eq.s32.totalorder %s41, 1
      %p106 = por %p104, %p105
      %p108 = scmp.ne.s32.totalorder %s91, %s107
      %p109 = scmp.eq.s32.totalorder %s41, 0
      %p110 = por %p108, %p109
      %s111 = ssub.s32 %s42, %s54
      %s112 = ssub.s32 %s43, %s50
      %s113 = sor.u32 %s111, %s112
      %p114 = scmp.eq.s32.totalorder %s113, 0
      %s116 = sadd.s32 %s115, 1
      %s117 = scalar_select %p114, %s115, %s116
      %p120 = pneg %p114
      %p121 = scmp.eq.s32.totalorder %s35, 1
      %p122 = por %p120, %p121
      %p123 = scmp.ne.s32.totalorder %s115, %s118
      %p124 = scmp.eq.s32.totalorder %s35, 0
      %p125 = por %p123, %p124
      %p126 = scmp.ne.s32.totalorder %s115, %s118
      %p127 = scmp.eq.s32.totalorder %s40, 1
      %p128 = por %p126, %p127
      %p129 = scmp.ne.s32.totalorder %s118, %s119
      %p130 = scmp.eq.s32.totalorder %s40, 0
      %p131 = por %p129, %p130
      %p132 = scmp.ne.s32.totalorder %s118, %s119
      %p133 = scmp.eq.s32.totalorder %s41, 1
      %p134 = por %p132, %p133
      %p136 = scmp.ne.s32.totalorder %s119, %s135
      %p137 = scmp.eq.s32.totalorder %s41, 0
      %p138 = por %p136, %p137
      %s140 = sadd.s32 %s139, 1
      %p143 = scmp.eq.s32.totalorder %s35, 1
      %p144 = scmp.ne.s32.totalorder %s139, %s141
      %p145 = scmp.eq.s32.totalorder %s35, 0
      %p146 = por %p144, %p145
      %p147 = scmp.ne.s32.totalorder %s139, %s141
      %p148 = scmp.eq.s32.totalorder %s40, 1
      %p149 = por %p147, %p148
      %p150 = scmp.ne.s32.totalorder %s141, %s142
      %p151 = scmp.eq.s32.totalorder %s40, 0
      %p152 = por %p150, %p151
      %p153 = scmp.ne.s32.totalorder %s141, %s142
      %p154 = scmp.eq.s32.totalorder %s41, 1
      %p155 = por %p153, %p154
      %p157 = scmp.ne.s32.totalorder %s142, %s156
      %p158 = scmp.eq.s32.totalorder %s41, 0
      %p159 = por %p157, %p158
      %s160 = ssub.s32 %s42, %s54
      %s161 = ssub.s32 %s43, %s50
      %s162 = sor.u32 %s160, %s161
      %p163 = scmp.eq.s32.totalorder %s162, 0
      %s165 = sadd.s32 %s164, 1
      %s166 = scalar_select %p163, %s164, %s165
      %p169 = pneg %p163
      %p170 = scmp.eq.s32.totalorder %s35, 1
      %p171 = por %p169, %p170
      %p172 = scmp.ne.s32.totalorder %s164, %s167
      %p173 = scmp.eq.s32.totalorder %s35, 0
      %p174 = por %p172, %p173
      %p175 = scmp.ne.s32.totalorder %s164, %s167
      %p176 = scmp.eq.s32.totalorder %s40, 1
      %p177 = por %p175, %p176
      %p178 = scmp.ne.s32.totalorder %s167, %s168
      %p179 = scmp.eq.s32.totalorder %s40, 0
      %p180 = por %p178, %p179
      %p181 = scmp.ne.s32.totalorder %s167, %s168
      %p182 = scmp.eq.s32.totalorder %s41, 1
      %p183 = por %p181, %p182
      %p185 = scmp.ne.s32.totalorder %s168, %s184
      %p186 = scmp.eq.s32.totalorder %s41, 0
      %p187 = por %p185, %p186
      %s188 = ssub.s32 %s42, %s54
      %s189 = ssub.s32 %s43, %s50
      %s190 = sor.u32 %s188, %s189
      %p191 = scmp.eq.s32.totalorder %s190, 0
      %s193 = sadd.s32 %s192, 1
      %s194 = scalar_select %p191, %s192, %s193
      %p197 = pneg %p191
      %p198 = scmp.eq.s32.totalorder %s35, 1
      %p199 = por %p197, %p198
      %p200 = scmp.ne.s32.totalorder %s192, %s195
      %p201 = scmp.eq.s32.totalorder %s35, 0
      %p202 = por %p200, %p201
      %p203 = scmp.ne.s32.totalorder %s192, %s195
      %p204 = scmp.eq.s32.totalorder %s40, 1
      %p205 = por %p203, %p204
      %p206 = scmp.ne.s32.totalorder %s195, %s196
      %p207 = scmp.eq.s32.totalorder %s40, 0
      %p208 = por %p206, %p207
      %p209 = scmp.ne.s32.totalorder %s195, %s196
      %p210 = scmp.eq.s32.totalorder %s41, 1
      %p211 = por %p209, %p210
      %p213 = scmp.ne.s32.totalorder %s196, %s212
      %p214 = scmp.eq.s32.totalorder %s41, 0
      %p215 = por %p213, %p214
      %s216 = ssub.s32 %s42, %s54
      %s217 = ssub.s32 %s43, %s50
      %s218 = sor.u32 %s216, %s217
      %p219 = scmp.eq.s32.totalorder %s218, 0
      %s221 = sadd.s32 %s220, 1
      %s222 = scalar_select %p219, %s220, %s221
      %p225 = pneg %p219
      %p226 = scmp.eq.s32.totalorder %s35, 1
      %p227 = por %p225, %p226
      %p228 = scmp.ne.s32.totalorder %s220, %s223
      %p229 = scmp.eq.s32.totalorder %s35, 0
      %p230 = por %p228, %p229
      %p231 = scmp.ne.s32.totalorder %s220, %s223
      %p232 = scmp.eq.s32.totalorder %s40, 1
      %p233 = por %p231, %p232
      %p234 = scmp.ne.s32.totalorder %s223, %s224
      %p235 = scmp.eq.s32.totalorder %s40, 0
      %p236 = por %p234, %p235
      %p237 = scmp.ne.s32.totalorder %s223, %s224
      %p238 = scmp.eq.s32.totalorder %s41, 1
      %p239 = por %p237, %p238
      %p241 = scmp.ne.s32.totalorder %s224, %s240
      %p242 = scmp.eq.s32.totalorder %s41, 0
      %p243 = por %p241, %p242
      %s244 = ssub.s32 %s42, %s54
      %s245 = ssub.s32 %s43, %s50
      %s246 = sor.u32 %s244, %s245
      %p247 = scmp.eq.s32.totalorder %s246, 0
      %s249 = sadd.s32 %s248, 1
      %s250 = scalar_select %p247, %s248, %s249
      %p253 = pneg %p247
      %p254 = scmp.eq.s32.totalorder %s35, 1
      %p255 = por %p253, %p254
      %p256 = scmp.ne.s32.totalorder %s248, %s251
      %p257 = scmp.eq.s32.totalorder %s35, 0
      %p258 = por %p256, %p257
      %p259 = scmp.ne.s32.totalorder %s248, %s251
      %p260 = scmp.eq.s32.totalorder %s40, 1
      %p261 = por %p259, %p260
      %p262 = scmp.ne.s32.totalorder %s251, %s252
      %p263 = scmp.eq.s32.totalorder %s40, 0
      %p264 = por %p262, %p263
      %p265 = scmp.ne.s32.totalorder %s251, %s252
      %p266 = scmp.eq.s32.totalorder %s41, 1
      %p267 = por %p265, %p266
      %p269 = scmp.ne.s32.totalorder %s252, %s268
      %p270 = scmp.eq.s32.totalorder %s41, 0
      %p271 = por %p269, %p270
      %s272 = ssub.s32 %s42, %s54
      %s273 = ssub.s32 %s43, %s50
      %s274 = sor.u32 %s272, %s273
      %p275 = scmp.eq.s32.totalorder %s274, 0
      %s277 = sadd.s32 %s276, 1
      %s278 = scalar_select %p275, %s276, %s277
      %p281 = pneg %p275
      %p282 = scmp.eq.s32.totalorder %s35, 1
      %p283 = por %p281, %p282
      %p284 = scmp.ne.s32.totalorder %s276, %s279
      %p285 = scmp.eq.s32.totalorder %s35, 0
      %p286 = por %p284, %p285
      %p287 = scmp.ne.s32.totalorder %s276, %s279
      %p288 = scmp.eq.s32.totalorder %s40, 1
      %p289 = por %p287, %p288
      %p290 = scmp.ne.s32.totalorder %s279, %s280
      %p291 = scmp.eq.s32.totalorder %s40, 0
      %p292 = por %p290, %p291
      %p293 = scmp.ne.s32.totalorder %s279, %s280
      %p294 = scmp.eq.s32.totalorder %s41, 1
      %p295 = por %p293, %p294
      %p297 = scmp.ne.s32.totalorder %s280, %s296
      %p298 = scmp.eq.s32.totalorder %s41, 0
      %p299 = por %p297, %p298
      %s300 = ssub.s32 %s42, %s54
      %s301 = ssub.s32 %s43, %s50
      %s302 = sor.u32 %s300, %s301
      %p303 = scmp.eq.s32.totalorder %s302, 0
      %s305 = sadd.s32 %s304, 1
      %s306 = scalar_select %p303, %s304, %s305
      %p309 = pneg %p303
      %p310 = scmp.eq.s32.totalorder %s35, 1
      %p311 = por %p309, %p310
      %p312 = scmp.ne.s32.totalorder %s304, %s307
      %p313 = scmp.eq.s32.totalorder %s35, 0
      %p314 = por %p312, %p313
      %p315 = scmp.ne.s32.totalorder %s304, %s307
      %p316 = scmp.eq.s32.totalorder %s40, 1
      %p317 = por %p315, %p316
      %p318 = scmp.ne.s32.totalorder %s307, %s308
      %p319 = scmp.eq.s32.totalorder %s40, 0
      %p320 = por %p318, %p319
      %p321 = scmp.ne.s32.totalorder %s307, %s308
      %p322 = scmp.eq.s32.totalorder %s41, 1
      %p323 = por %p321, %p322
      %p325 = scmp.ne.s32.totalorder %s308, %s324
      %p326 = scmp.eq.s32.totalorder %s41, 0
      %p327 = por %p325, %p326
      %p328 = scmp.le.s32.totalorder 1, %s35
      %p329 = scmp.lt.s32.totalorder %s35, 3
      %p330 = pnand %p328, %p329
      %p331 = pneg %p330
      // Predicated region
      $region9: #{tpu_custom_call.1} parent=5 // pred_check
        _
      $region10: #{tpu_custom_call.1} parent=5 // pred_check_branch
        %333 = sbr.rel (%p330) target = $region12
      $region11: #{tpu_custom_call.1} parent=5 // pred_region
        %s334 = ssub.s32 %s35, 1
        // Predicated region
        $region13: #{tpu_custom_call.1} parent=11 // pred_check
          %p335 = pneg %p152
        $region14: #{tpu_custom_call.1} parent=11 // pred_check_branch
          %337 = sbr.rel (%p335) target = $region16
        $region15: #{tpu_custom_call.1} parent=11 // pred_region
          %339 = vsyncadd [#allocation5], 0
          %s341 = sshll.u32 %s3, 4
          %s342 = int_to_ptr.vmem [resolvable:$true] %s341
          %344 = dma.vmem_to_smem %s342, 16, [#allocation9], [#allocation5]
        $region16: #{tpu_custom_call.1} parent=11 // pred_fallthru
          _
      $region12: #{tpu_custom_call.1} parent=5 // pred_fallthru
        _
      %p345 = scmp.lt.s32.totalorder %s35, 2
      // Predicated region
      $region17: #{tpu_custom_call.1} parent=5 // pred_check
        %p346 = pneg %p345
      $region18: #{tpu_custom_call.1} parent=5 // pred_check_branch
        %348 = sbr.rel (%p346) target = $region20
      $region19: #{tpu_custom_call.1} parent=5 // pred_region
        // Predicated region
        $region21: #{tpu_custom_call.1} parent=19 // pred_check
          %p349 = pneg %p69
        $region22: #{tpu_custom_call.1} parent=19 // pred_check_branch
          %351 = sbr.rel (%p349) target = $region24
        $region23: #{tpu_custom_call.1} parent=19 // pred_region
          %s352 = sand.u32 %s59, 1
          %s353 = scalar_lea.sflag [#allocation3], %s352
          %s354 = sand.u32 %s59, 1
          %s355 = smul.addr %s354, 8
          %s356 = scalar_lea.vmem [#allocation2], %s355
          %358 = vsyncadd %s353, 0
          %s359 = smul.addr %s42, 4
          %s360 = sadd.s32 %s43, %s359
          %s361 = smul.addr %s360, 2
          %s362 = scalar_lea.hbm %s0, %s361
          %s363 = sshll.u32 %s362, 4
          %s364 = int_to_ptr.hbm [resolvable:$true] %s363
          %s365 = sshll.u32 %s356, 4
          %s366 = int_to_ptr.vmem [resolvable:$true] %s365
          %371 = dma.hbm_to_vmem [thread:$0]  %s364, 128, %s366, %s353, 32, 32, 2
        $region24: #{tpu_custom_call.1} parent=19 // pred_fallthru
          _
        // Predicated region
        $region25: #{tpu_custom_call.1} parent=19 // pred_check
          %p372 = pneg %p97
        $region26: #{tpu_custom_call.1} parent=19 // pred_check_branch
          %374 = sbr.rel (%p372) target = $region28
        $region27: #{tpu_custom_call.1} parent=19 // pred_region
          %s375 = sand.u32 %s35, 1
          %s376 = scalar_lea.sflag [#allocation7], %s375
          %s377 = sand.u32 %s87, 1
          %s378 = smul.addr %s377, 8
          %s379 = scalar_lea.vmem [#allocation6], %s378
          %381 = vsyncadd %s376, 0
          %s382 = smul.addr %s42, 4
          %s383 = sadd.s32 %s43, %s382
          %s384 = smul.addr %s383, 2
          %s385 = scalar_lea.hbm %s1, %s384
          %s386 = sshll.u32 %s385, 4
          %s387 = int_to_ptr.hbm [resolvable:$true] %s386
          %s388 = sshll.u32 %s379, 4
          %s389 = int_to_ptr.vmem [resolvable:$true] %s388
          %394 = dma.hbm_to_vmem [thread:$0]  %s387, 128, %s389, %s376, 32, 32, 2
        $region28: #{tpu_custom_call.1} parent=19 // pred_fallthru
          _
        // Predicated region
        $region29: #{tpu_custom_call.1} parent=19 // pred_check
          %p395 = pneg %p125
        $region30: #{tpu_custom_call.1} parent=19 // pred_check_branch
          %397 = sbr.rel (%p395) target = $region32
        $region31: #{tpu_custom_call.1} parent=19 // pred_region
          %s398 = sand.u32 %s35, 1
          %s399 = scalar_lea.sflag [#allocation7], %s398
          %s400 = sand.u32 %s115, 1
          %s401 = smul.addr %s400, 8
          %s402 = scalar_lea.vmem [#allocation8], %s401
          %404 = vsyncadd %s399, 0
          %s405 = smul.addr %s42, 4
          %s406 = sadd.s32 %s43, %s405
          %s407 = smul.addr %s406, 2
          %s408 = scalar_lea.hbm %s2, %s407
          %s409 = sshll.u32 %s408, 4
          %s410 = int_to_ptr.hbm [resolvable:$true] %s409
          %s411 = sshll.u32 %s402, 4
          %s412 = int_to_ptr.vmem [resolvable:$true] %s411
          %417 = dma.hbm_to_vmem [thread:$0]  %s410, 128, %s412, %s399, 32, 32, 2
        $region32: #{tpu_custom_call.1} parent=19 // pred_fallthru
          _
      $region20: #{tpu_custom_call.1} parent=5 // pred_fallthru
        _
      %p418 = scmp.le.s32.totalorder 1, %s35
      %p419 = scmp.lt.s32.totalorder %s35, 3
      %p420 = pnand %p418, %p419
      %p421 = pneg %p420
      // Predicated region
      $region33: #{tpu_custom_call.1} parent=5 // pred_check
        _
      $region34: #{tpu_custom_call.1} parent=5 // pred_check_branch
        %423 = sbr.rel (%p420) target = $region36
      $region35: #{tpu_custom_call.1} parent=5 // pred_region
        %s424 = ssub.s32 %s35, 1
        %s425 = sand.u32 %s62, 1
        %s426 = scalar_lea.sflag [#allocation3], %s425
        %s427 = sand.u32 %s62, 1
        %s428 = smul.addr %s427, 8
        %s429 = scalar_lea.vmem [#allocation2], %s428
        // Predicated region
        $region37: #{tpu_custom_call.1} parent=35 // pred_check
          %p430 = pneg %p75
        $region38: #{tpu_custom_call.1} parent=35 // pred_check_branch
          %432 = sbr.rel (%p430) target = $region40
        $region39: #{tpu_custom_call.1} parent=35 // pred_region
          %434 = dma.done %s426, 128
        $region40: #{tpu_custom_call.1} parent=35 // pred_fallthru
          _
        %s435 = sand.u32 %s40, 1
        %s436 = scalar_lea.sflag [#allocation7], %s435
        %s437 = sand.u32 %s90, 1
        %s438 = smul.addr %s437, 8
        %s439 = scalar_lea.vmem [#allocation6], %s438
        // Predicated region
        $region41: #{tpu_custom_call.1} parent=35 // pred_check
          %p440 = pneg %p103
        $region42: #{tpu_custom_call.1} parent=35 // pred_check_branch
          %442 = sbr.rel (%p440) target = $region44
        $region43: #{tpu_custom_call.1} parent=35 // pred_region
          %444 = dma.done %s436, 128
        $region44: #{tpu_custom_call.1} parent=35 // pred_fallthru
          _
        %s445 = sand.u32 %s40, 1
        %s446 = scalar_lea.sflag [#allocation7], %s445
        %s447 = sand.u32 %s118, 1
        %s448 = smul.addr %s447, 8
        %s449 = scalar_lea.vmem [#allocation8], %s448
        // Predicated region
        $region45: #{tpu_custom_call.1} parent=35 // pred_check
          %p450 = pneg %p131
        $region46: #{tpu_custom_call.1} parent=35 // pred_check_branch
          %452 = sbr.rel (%p450) target = $region48
        $region47: #{tpu_custom_call.1} parent=35 // pred_region
          %454 = dma.done %s446, 128
        $region48: #{tpu_custom_call.1} parent=35 // pred_fallthru
          _
        // Predicated region
        $region49: #{tpu_custom_call.1} parent=35 // pred_check
          %p455 = pneg %p152
        $region50: #{tpu_custom_call.1} parent=35 // pred_check_branch
          %457 = sbr.rel (%p455) target = $region52
        $region51: #{tpu_custom_call.1} parent=35 // pred_region
          %459 = dma.done [#allocation5], 16
        $region52: #{tpu_custom_call.1} parent=35 // pred_fallthru
          _
        %460 = sfence
        %s461 = sand.u32 %s62, 1
        %s462 = scalar_lea.sflag [#allocation3], %s461
        %s463 = sand.u32 %s62, 1
        %s464 = smul.addr %s463, 8
        %s465 = scalar_lea.vmem [#allocation2], %s464
        %p466 = pneg %p75
        %p467 = pneg %p72
        %s468 = sand.u32 %s40, 1
        %s469 = scalar_lea.sflag [#allocation7], %s468
        %s470 = sand.u32 %s90, 1
        %s471 = smul.addr %s470, 8
        %s472 = scalar_lea.vmem [#allocation6], %s471
        %p473 = pneg %p103
        %p474 = pneg %p100
        %s475 = sand.u32 %s40, 1
        %s476 = scalar_lea.sflag [#allocation7], %s475
        %s477 = sand.u32 %s118, 1
        %s478 = smul.addr %s477, 8
        %s479 = scalar_lea.vmem [#allocation8], %s478
        %p480 = pneg %p131
        %p481 = pneg %p128
        %p482 = pneg %p152
        %p483 = pneg %p149
        %p484 = pneg %p180
        %p485 = pneg %p177
        %s486 = sand.u32 %s167, 1
        %s487 = scalar_lea.sflag [#allocation4], %s486
        %s488 = sand.u32 %s167, 1
        %s489 = smul.addr %s488, 8
        %s490 = scalar_lea.vmem [#allocation10], %s489
        %p491 = pneg %p208
        %p492 = pneg %p205
        %s493 = sand.u32 %s40, 1
        %s494 = scalar_lea.sflag [#allocation12], %s493
        %s495 = sand.u32 %s195, 1
        %s496 = smul.addr %s495, 8
        %s497 = scalar_lea.vmem [#allocation11], %s496
        %p498 = pneg %p236
        %p499 = pneg %p233
        %s500 = sand.u32 %s40, 1
        %s501 = scalar_lea.sflag [#allocation12], %s500
        %s502 = sand.u32 %s223, 1
        %s503 = smul.addr %s502, 8
        %s504 = scalar_lea.vmem [#allocation13], %s503
        %p505 = pneg %p264
        %p506 = pneg %p261
        %s507 = sand.u32 %s40, 1
        %s508 = scalar_lea.sflag [#allocation15], %s507
        %s509 = sand.u32 %s251, 1
        %s510 = smul.addr %s509, 8
        %s511 = scalar_lea.vmem [#allocation14], %s510
        %p512 = pneg %p292
        %p513 = pneg %p289
        %s514 = sand.u32 %s40, 1
        %s515 = scalar_lea.sflag [#allocation15], %s514
        %s516 = sand.u32 %s279, 1
        %s517 = smul.addr %s516, 8
        %s518 = scalar_lea.vmem [#allocation16], %s517
        %p519 = pneg %p320
        %p520 = pneg %p317
        %s521 = sand.u32 %s307, 1
        %s522 = scalar_lea.sflag [#allocation18], %s521
        %s523 = sand.u32 %s307, 1
        %s524 = smul.addr %s523, 8
        %s525 = scalar_lea.vmem [#allocation17], %s524
        %s526 = smul.u32 %s45, 256
        %s527 = scvt.s32.f32 %s526
        %v528 = vlaneseq
        %v529 = vshrl.u32 %v528, 7
        %v530 = vcvt.s32.f32 %v529
        %v531 = vlaneseq
        %v532 = vand.u32 %v531, 127
        %v533 = vcvt.s32.f32 %v532
        %v534 = vmul.f32 %v530, 128.0
        %v535 = vstv %s527
        %v536 = vadd.f32 %v535, %v534
        %v537 = vadd.f32 %v536, %v533
        %v538 = vmul.f32 %v537, 0.0625
        %v539 = vfloor.f32 %v538
        %v540 = vmul.f32 %v539, 16.0
        %v541 = vsub.f32 %v537, %v540
        %vm542 = vcmp.lt.f32.partialorder %v541, 0.0
        %v543 = vsel %vm542, -1.0, 0.0
        %v544 = vadd.f32 %v539, %v543
        %vm545 = vcmp.ge.f32.partialorder %v541, 16.0
        %v546 = vsel %vm545, 1.0, 0.0
        %v547 = vadd.f32 %v544, %v546
        %v548 = vmul.f32 %v547, 16.0
        %v549 = vsub.f32 %v537, %v548
        %v550 = vmul.f32 %v547, 0.125
        %v551 = vadd.f32 %v550, -0.9375
        %v552 = vmul.f32 %v549, 0.125
        %v553 = vadd.f32 %v552, -0.9375
        %s554 = sld [smem:[#allocation9 + $0x38]]
        %v555 = vstv %s554
        %v556 = vmul.f32 %v555, %v551
        %s557 = sld [smem:[#allocation9 + $0x3c]]
        %v558 = vstv %s557
        %v559 = vmul.f32 %v558, %v553
        %v560 = vadd.f32 %v556, %v559
        %s561 = sld [smem:[#allocation9 + $0x39]]
        %v562 = vstv %s561
        %v563 = vmul.f32 %v562, %v551
        %s564 = sld [smem:[#allocation9 + $0x3d]]
        %v565 = vstv %s564
        %v566 = vmul.f32 %v565, %v553
        %v567 = vadd.f32 %v563, %v566
        %s568 = sld [smem:[#allocation9 + $0x3a]]
        %v569 = vstv %s568
        %v570 = vmul.f32 %v569, %v551
        %s571 = sld [smem:[#allocation9 + $0x3e]]
        %v572 = vstv %s571
        %v573 = vmul.f32 %v572, %v553
        %v574 = vadd.f32 %v570, %v573
        %s575 = sld [smem:[#allocation9 + $0x3b]]
        %v576 = vstv %s575
        %v577 = vmul.f32 %v576, %v551
        %s578 = sld [smem:[#allocation9 + $0x3f]]
        %v579 = vstv %s578
        %v580 = vmul.f32 %v579, %v553
        %v581 = vadd.f32 %v577, %v580
        %v582 = vld [vmem:[%s429] sm:$0x3]
        %s583 = scalar_lea.vmem %s429, 2 [#allocation2]
        %v584 = vld [vmem:[%s583] sm:$0x3]
        %s585 = scalar_lea.vmem %s429, 4 [#allocation2]
        %v586 = vld [vmem:[%s585] sm:$0x3]
        %s587 = scalar_lea.vmem %s429, 6 [#allocation2]
        %v588 = vld [vmem:[%s587] sm:$0x3]
        %v589 = vld [vmem:[%s439] sm:$0x3]
        %s590 = scalar_lea.vmem %s439, 2 [#allocation6]
        %v591 = vld [vmem:[%s590] sm:$0x3]
        %s592 = scalar_lea.vmem %s439, 4 [#allocation6]
        %v593 = vld [vmem:[%s592] sm:$0x3]
        %s594 = scalar_lea.vmem %s439, 6 [#allocation6]
        %v595 = vld [vmem:[%s594] sm:$0x3]
        %v596 = vld [vmem:[%s449] sm:$0x3]
        %s597 = scalar_lea.vmem %s449, 2 [#allocation8]
        %v598 = vld [vmem:[%s597] sm:$0x3]
        %s599 = scalar_lea.vmem %s449, 4 [#allocation8]
        %v600 = vld [vmem:[%s599] sm:$0x3]
        %s601 = scalar_lea.vmem %s449, 6 [#allocation8]
        %v602 = vld [vmem:[%s601] sm:$0x3]
        %s603 = sld [smem:[#allocation9]]
        %v604 = vstv %s603
        %v605 = vmul.f32 %v604, %v582
        %s606 = sld [smem:[#allocation9 + $0x4]]
        %v607 = vstv %s606
        %v608 = vmul.f32 %v607, %v584
        %v609 = vadd.f32 %v605, %v608
        %s610 = sld [smem:[#allocation9 + $0x8]]
        %v611 = vstv %s610
        %v612 = vmul.f32 %v611, %v586
        %v613 = vadd.f32 %v609, %v612
        %s614 = sld [smem:[#allocation9 + $0xc]]
        %v615 = vstv %s614
        %v616 = vmul.f32 %v615, %v588
        %v617 = vadd.f32 %v613, %v616
        %s618 = sld [smem:[#allocation9 + $0x10]]
        %v619 = vstv %s618
        %v620 = vadd.f32 %v617, %v619
        %s621 = sld [smem:[#allocation9 + $0x1]]
        %v622 = vstv %s621
        %v623 = vmul.f32 %v622, %v582
        %s624 = sld [smem:[#allocation9 + $0x5]]
        %v625 = vstv %s624
        %v626 = vmul.f32 %v625, %v584
        %v627 = vadd.f32 %v623, %v626
        %s628 = sld [smem:[#allocation9 + $0x9]]
        %v629 = vstv %s628
        %v630 = vmul.f32 %v629, %v586
        %v631 = vadd.f32 %v627, %v630
        %s632 = sld [smem:[#allocation9 + $0xd]]
        %v633 = vstv %s632
        %v634 = vmul.f32 %v633, %v588
        %v635 = vadd.f32 %v631, %v634
        %s636 = sld [smem:[#allocation9 + $0x11]]
        %v637 = vstv %s636
        %v638 = vadd.f32 %v635, %v637
        %s639 = sld [smem:[#allocation9 + $0x2]]
        %v640 = vstv %s639
        %v641 = vmul.f32 %v640, %v582
        %s642 = sld [smem:[#allocation9 + $0x6]]
        %v643 = vstv %s642
        %v644 = vmul.f32 %v643, %v584
        %v645 = vadd.f32 %v641, %v644
        %s646 = sld [smem:[#allocation9 + $0xa]]
        %v647 = vstv %s646
        %v648 = vmul.f32 %v647, %v586
        %v649 = vadd.f32 %v645, %v648
        %s650 = sld [smem:[#allocation9 + $0xe]]
        %v651 = vstv %s650
        %v652 = vmul.f32 %v651, %v588
        %v653 = vadd.f32 %v649, %v652
        %s654 = sld [smem:[#allocation9 + $0x12]]
        %v655 = vstv %s654
        %v656 = vadd.f32 %v653, %v655
        %s657 = sld [smem:[#allocation9 + $0x3]]
        %v658 = vstv %s657
        %v659 = vmul.f32 %v658, %v582
        %s660 = sld [smem:[#allocation9 + $0x7]]
        %v661 = vstv %s660
        %v662 = vmul.f32 %v661, %v584
        %v663 = vadd.f32 %v659, %v662
        %s664 = sld [smem:[#allocation9 + $0xb]]
        %v665 = vstv %s664
        %v666 = vmul.f32 %v665, %v586
        %v667 = vadd.f32 %v663, %v666
        %s668 = sld [smem:[#allocation9 + $0xf]]
        %v669 = vstv %s668
        %v670 = vmul.f32 %v669, %v588
        %v671 = vadd.f32 %v667, %v670
        %s672 = sld [smem:[#allocation9 + $0x13]]
        %v673 = vstv %s672
        %v674 = vadd.f32 %v671, %v673
        %s675 = sld [smem:[#allocation9 + $0x28]]
        %v676 = vstv %s675
        %v677 = vmul.f32 %v676, %v620
        %s678 = sld [smem:[#allocation9 + $0x2c]]
        %v679 = vstv %s678
        %v680 = vmul.f32 %v679, %v638
        %v681 = vadd.f32 %v677, %v680
        %s682 = sld [smem:[#allocation9 + $0x30]]
        %v683 = vstv %s682
        %v684 = vmul.f32 %v683, %v656
        %v685 = vadd.f32 %v681, %v684
        %s686 = sld [smem:[#allocation9 + $0x34]]
        %v687 = vstv %s686
        %v688 = vmul.f32 %v687, %v674
        %v689 = vadd.f32 %v685, %v688
        %v690 = vadd.f32 %v689, %v560
        %s691 = sld [smem:[#allocation9 + $0x40]]
        %v692 = vstv %s691
        %v693 = vadd.f32 %v690, %v692
        %s694 = sld [smem:[#allocation9 + $0x29]]
        %v695 = vstv %s694
        %v696 = vmul.f32 %v695, %v620
        %s697 = sld [smem:[#allocation9 + $0x2d]]
        %v698 = vstv %s697
        %v699 = vmul.f32 %v698, %v638
        %v700 = vadd.f32 %v696, %v699
        %s701 = sld [smem:[#allocation9 + $0x31]]
        %v702 = vstv %s701
        %v703 = vmul.f32 %v702, %v656
        %v704 = vadd.f32 %v700, %v703
        %s705 = sld [smem:[#allocation9 + $0x35]]
        %v706 = vstv %s705
        %v707 = vmul.f32 %v706, %v674
        %v708 = vadd.f32 %v704, %v707
        %v709 = vadd.f32 %v708, %v567
        %s710 = sld [smem:[#allocation9 + $0x41]]
        %v711 = vstv %s710
        %v712 = vadd.f32 %v709, %v711
        %s713 = sld [smem:[#allocation9 + $0x2a]]
        %v714 = vstv %s713
        %v715 = vmul.f32 %v714, %v620
        %s716 = sld [smem:[#allocation9 + $0x2e]]
        %v717 = vstv %s716
        %v718 = vmul.f32 %v717, %v638
        %v719 = vadd.f32 %v715, %v718
        %s720 = sld [smem:[#allocation9 + $0x32]]
        %v721 = vstv %s720
        %v722 = vmul.f32 %v721, %v656
        %v723 = vadd.f32 %v719, %v722
        %s724 = sld [smem:[#allocation9 + $0x36]]
        %v725 = vstv %s724
        %v726 = vmul.f32 %v725, %v674
        %v727 = vadd.f32 %v723, %v726
        %v728 = vadd.f32 %v727, %v574
        %s729 = sld [smem:[#allocation9 + $0x42]]
        %v730 = vstv %s729
        %v731 = vadd.f32 %v728, %v730
        %s732 = sld [smem:[#allocation9 + $0x2b]]
        %v733 = vstv %s732
        %v734 = vmul.f32 %v733, %v620
        %s735 = sld [smem:[#allocation9 + $0x2f]]
        %v736 = vstv %s735
        %v737 = vmul.f32 %v736, %v638
        %v738 = vadd.f32 %v734, %v737
        %s739 = sld [smem:[#allocation9 + $0x33]]
        %v740 = vstv %s739
        %v741 = vmul.f32 %v740, %v656
        %v742 = vadd.f32 %v738, %v741
        %s743 = sld [smem:[#allocation9 + $0x37]]
        %v744 = vstv %s743
        %v745 = vmul.f32 %v744, %v674
        %v746 = vadd.f32 %v742, %v745
        %v747 = vadd.f32 %v746, %v581
        %s748 = sld [smem:[#allocation9 + $0x43]]
        %v749 = vstv %s748
        %v750 = vadd.f32 %v747, %v749
        %v751 = vsub.f32 %v589, %v693
        %v752 = vsub.f32 %v591, %v712
        %v753 = vsub.f32 %v593, %v731
        %v754 = vsub.f32 %v595, %v750
        %s755 = sld [smem:[#allocation9 + $0x14]]
        %v756 = vstv %s755
        %v757 = vmul.f32 %v756, %v751
        %s758 = sld [smem:[#allocation9 + $0x18]]
        %v759 = vstv %s758
        %v760 = vmul.f32 %v759, %v752
        %v761 = vadd.f32 %v757, %v760
        %s762 = sld [smem:[#allocation9 + $0x1c]]
        %v763 = vstv %s762
        %v764 = vmul.f32 %v763, %v753
        %v765 = vadd.f32 %v761, %v764
        %s766 = sld [smem:[#allocation9 + $0x20]]
        %v767 = vstv %s766
        %v768 = vmul.f32 %v767, %v754
        %v769 = vadd.f32 %v765, %v768
        %s770 = sld [smem:[#allocation9 + $0x24]]
        %v771 = vstv %s770
        %v772 = vadd.f32 %v769, %v771
        %s773 = sld [smem:[#allocation9 + $0x15]]
        %v774 = vstv %s773
        %v775 = vmul.f32 %v774, %v751
        %s776 = sld [smem:[#allocation9 + $0x19]]
        %v777 = vstv %s776
        %v778 = vmul.f32 %v777, %v752
        %v779 = vadd.f32 %v775, %v778
        %s780 = sld [smem:[#allocation9 + $0x1d]]
        %v781 = vstv %s780
        %v782 = vmul.f32 %v781, %v753
        %v783 = vadd.f32 %v779, %v782
        %s784 = sld [smem:[#allocation9 + $0x21]]
        %v785 = vstv %s784
        %v786 = vmul.f32 %v785, %v754
        %v787 = vadd.f32 %v783, %v786
        %s788 = sld [smem:[#allocation9 + $0x25]]
        %v789 = vstv %s788
        %v790 = vadd.f32 %v787, %v789
        %s791 = sld [smem:[#allocation9 + $0x16]]
        %v792 = vstv %s791
        %v793 = vmul.f32 %v792, %v751
        %s794 = sld [smem:[#allocation9 + $0x1a]]
        %v795 = vstv %s794
        %v796 = vmul.f32 %v795, %v752
        %v797 = vadd.f32 %v793, %v796
        %s798 = sld [smem:[#allocation9 + $0x1e]]
        %v799 = vstv %s798
        %v800 = vmul.f32 %v799, %v753
        %v801 = vadd.f32 %v797, %v800
        %s802 = sld [smem:[#allocation9 + $0x22]]
        %v803 = vstv %s802
        %v804 = vmul.f32 %v803, %v754
        %v805 = vadd.f32 %v801, %v804
        %s806 = sld [smem:[#allocation9 + $0x26]]
        %v807 = vstv %s806
        %v808 = vadd.f32 %v805, %v807
        %s809 = sld [smem:[#allocation9 + $0x17]]
        %v810 = vstv %s809
        %v811 = vmul.f32 %v810, %v751
        %s812 = sld [smem:[#allocation9 + $0x1b]]
        %v813 = vstv %s812
        %v814 = vmul.f32 %v813, %v752
        %v815 = vadd.f32 %v811, %v814
        %s816 = sld [smem:[#allocation9 + $0x1f]]
        %v817 = vstv %s816
        %v818 = vmul.f32 %v817, %v753
        %v819 = vadd.f32 %v815, %v818
        %s820 = sld [smem:[#allocation9 + $0x23]]
        %v821 = vstv %s820
        %v822 = vmul.f32 %v821, %v754
        %v823 = vadd.f32 %v819, %v822
        %s824 = sld [smem:[#allocation9 + $0x27]]
        %v825 = vstv %s824
        %v826 = vadd.f32 %v823, %v825
        %v827 = vadd.f32 %v772, %v693
        %v828 = vadd.f32 %v790, %v712
        %v829 = vadd.f32 %v808, %v731
        %v830 = vadd.f32 %v826, %v750
        %v831 = vmul.f32 %v676, %v827
        %v832 = vmul.f32 %v679, %v828
        %v833 = vadd.f32 %v831, %v832
        %v834 = vmul.f32 %v683, %v829
        %v835 = vadd.f32 %v833, %v834
        %v836 = vmul.f32 %v687, %v830
        %v837 = vadd.f32 %v835, %v836
        %v838 = vadd.f32 %v837, %v560
        %s839 = sld [smem:[#allocation9 + $0x44]]
        %v840 = vstv %s839
        %v841 = vadd.f32 %v838, %v840
        %v842 = vmul.f32 %v695, %v827
        %v843 = vmul.f32 %v698, %v828
        %v844 = vadd.f32 %v842, %v843
        %v845 = vmul.f32 %v702, %v829
        %v846 = vadd.f32 %v844, %v845
        %v847 = vmul.f32 %v706, %v830
        %v848 = vadd.f32 %v846, %v847
        %v849 = vadd.f32 %v848, %v567
        %s850 = sld [smem:[#allocation9 + $0x45]]
        %v851 = vstv %s850
        %v852 = vadd.f32 %v849, %v851
        %v853 = vmul.f32 %v714, %v827
        %v854 = vmul.f32 %v717, %v828
        %v855 = vadd.f32 %v853, %v854
        %v856 = vmul.f32 %v721, %v829
        %v857 = vadd.f32 %v855, %v856
        %v858 = vmul.f32 %v725, %v830
        %v859 = vadd.f32 %v857, %v858
        %v860 = vadd.f32 %v859, %v574
        %s861 = sld [smem:[#allocation9 + $0x46]]
        %v862 = vstv %s861
        %v863 = vadd.f32 %v860, %v862
        %v864 = vmul.f32 %v733, %v827
        %v865 = vmul.f32 %v736, %v828
        %v866 = vadd.f32 %v864, %v865
        %v867 = vmul.f32 %v740, %v829
        %v868 = vadd.f32 %v866, %v867
        %v869 = vmul.f32 %v744, %v830
        %v870 = vadd.f32 %v868, %v869
        %v871 = vadd.f32 %v870, %v581
        %s872 = sld [smem:[#allocation9 + $0x47]]
        %v873 = vstv %s872
        %v874 = vadd.f32 %v871, %v873
        %v875 = vsub.f32 %v596, %v841
        %v876 = vsub.f32 %v598, %v852
        %v877 = vsub.f32 %v600, %v863
        %v878 = vsub.f32 %v602, %v874
        %v879 = vmul.f32 %v756, %v875
        %v880 = vmul.f32 %v759, %v876
        %v881 = vadd.f32 %v879, %v880
        %v882 = vmul.f32 %v763, %v877
        %v883 = vadd.f32 %v881, %v882
        %v884 = vmul.f32 %v767, %v878
        %v885 = vadd.f32 %v883, %v884
        %v886 = vadd.f32 %v885, %v771
        %v887 = vmul.f32 %v774, %v875
        %v888 = vmul.f32 %v777, %v876
        %v889 = vadd.f32 %v887, %v888
        %v890 = vmul.f32 %v781, %v877
        %v891 = vadd.f32 %v889, %v890
        %v892 = vmul.f32 %v785, %v878
        %v893 = vadd.f32 %v891, %v892
        %v894 = vadd.f32 %v893, %v789
        %v895 = vmul.f32 %v792, %v875
        %v896 = vmul.f32 %v795, %v876
        %v897 = vadd.f32 %v895, %v896
        %v898 = vmul.f32 %v799, %v877
        %v899 = vadd.f32 %v897, %v898
        %v900 = vmul.f32 %v803, %v878
        %v901 = vadd.f32 %v899, %v900
        %v902 = vadd.f32 %v901, %v807
        %v903 = vmul.f32 %v810, %v875
        %v904 = vmul.f32 %v813, %v876
        %v905 = vadd.f32 %v903, %v904
        %v906 = vmul.f32 %v817, %v877
        %v907 = vadd.f32 %v905, %v906
        %v908 = vmul.f32 %v821, %v878
        %v909 = vadd.f32 %v907, %v908
        %v910 = vadd.f32 %v909, %v825
        %v911 = vadd.f32 %v886, %v841
        %v912 = vadd.f32 %v894, %v852
        %v913 = vadd.f32 %v902, %v863
        %v914 = vadd.f32 %v910, %v874
        %915 = vst [vmem:[%s490] sm:$0x3] %v827
        %s916 = scalar_lea.vmem %s490, 2 [#allocation10]
        %917 = vst [vmem:[%s916] sm:$0x3] %v828
        %s918 = scalar_lea.vmem %s490, 4 [#allocation10]
        %919 = vst [vmem:[%s918] sm:$0x3] %v829
        %s920 = scalar_lea.vmem %s490, 6 [#allocation10]
        %921 = vst [vmem:[%s920] sm:$0x3] %v830
        %922 = vst [vmem:[%s497] sm:$0x3] %v911
        %s923 = scalar_lea.vmem %s497, 2 [#allocation11]
        %924 = vst [vmem:[%s923] sm:$0x3] %v912
        %s925 = scalar_lea.vmem %s497, 4 [#allocation11]
        %926 = vst [vmem:[%s925] sm:$0x3] %v913
        %s927 = scalar_lea.vmem %s497, 6 [#allocation11]
        %928 = vst [vmem:[%s927] sm:$0x3] %v914
        %929 = vst [vmem:[%s504] sm:$0x3] %v772
        %s930 = scalar_lea.vmem %s504, 2 [#allocation13]
        %931 = vst [vmem:[%s930] sm:$0x3] %v790
        %s932 = scalar_lea.vmem %s504, 4 [#allocation13]
        %933 = vst [vmem:[%s932] sm:$0x3] %v808
        %s934 = scalar_lea.vmem %s504, 6 [#allocation13]
        %935 = vst [vmem:[%s934] sm:$0x3] %v826
        %936 = vst [vmem:[%s511] sm:$0x3] %v886
        %s937 = scalar_lea.vmem %s511, 2 [#allocation14]
        %938 = vst [vmem:[%s937] sm:$0x3] %v894
        %s939 = scalar_lea.vmem %s511, 4 [#allocation14]
        %940 = vst [vmem:[%s939] sm:$0x3] %v902
        %s941 = scalar_lea.vmem %s511, 6 [#allocation14]
        %942 = vst [vmem:[%s941] sm:$0x3] %v910
        %943 = vst [vmem:[%s518] sm:$0x3] %v751
        %s944 = scalar_lea.vmem %s518, 2 [#allocation16]
        %945 = vst [vmem:[%s944] sm:$0x3] %v752
        %s946 = scalar_lea.vmem %s518, 4 [#allocation16]
        %947 = vst [vmem:[%s946] sm:$0x3] %v753
        %s948 = scalar_lea.vmem %s518, 6 [#allocation16]
        %949 = vst [vmem:[%s948] sm:$0x3] %v754
        %950 = vst [vmem:[%s525] sm:$0x3] %v875
        %s951 = scalar_lea.vmem %s525, 2 [#allocation17]
        %952 = vst [vmem:[%s951] sm:$0x3] %v876
        %s953 = scalar_lea.vmem %s525, 4 [#allocation17]
        %954 = vst [vmem:[%s953] sm:$0x3] %v877
        %s955 = scalar_lea.vmem %s525, 6 [#allocation17]
        %956 = vst [vmem:[%s955] sm:$0x3] %v878
        %s957 = sand.u32 %s167, 1
        %s958 = scalar_lea.sflag [#allocation4], %s957
        %s959 = sand.u32 %s167, 1
        %s960 = smul.addr %s959, 8
        %s961 = scalar_lea.vmem [#allocation10], %s960
        %s962 = sand.u32 %s40, 1
        %s963 = scalar_lea.sflag [#allocation12], %s962
        %s964 = sand.u32 %s195, 1
        %s965 = smul.addr %s964, 8
        %s966 = scalar_lea.vmem [#allocation11], %s965
        %s967 = sand.u32 %s40, 1
        %s968 = scalar_lea.sflag [#allocation12], %s967
        %s969 = sand.u32 %s223, 1
        %s970 = smul.addr %s969, 8
        %s971 = scalar_lea.vmem [#allocation13], %s970
        %s972 = sand.u32 %s40, 1
        %s973 = scalar_lea.sflag [#allocation15], %s972
        %s974 = sand.u32 %s251, 1
        %s975 = smul.addr %s974, 8
        %s976 = scalar_lea.vmem [#allocation14], %s975
        %s977 = sand.u32 %s40, 1
        %s978 = scalar_lea.sflag [#allocation15], %s977
        %s979 = sand.u32 %s279, 1
        %s980 = smul.addr %s979, 8
        %s981 = scalar_lea.vmem [#allocation16], %s980
        %s982 = sand.u32 %s307, 1
        %s983 = scalar_lea.sflag [#allocation18], %s982
        %s984 = sand.u32 %s307, 1
        %s985 = smul.addr %s984, 8
        %s986 = scalar_lea.vmem [#allocation17], %s985
        // Predicated region
        $region53: #{tpu_custom_call.1} parent=35 // pred_check
          %p987 = pneg %p177
        $region54: #{tpu_custom_call.1} parent=35 // pred_check_branch
          %989 = sbr.rel (%p987) target = $region56
        $region55: #{tpu_custom_call.1} parent=35 // pred_region
          %991 = vsyncadd %s958, 0
          %s992 = smul.addr %s44, 4
          %s993 = sadd.s32 %s45, %s992
          %s994 = smul.addr %s993, 2
          %s995 = scalar_lea.hbm %s4, %s994
          %s996 = sshll.u32 %s961, 4
          %s997 = int_to_ptr.vmem [resolvable:$true] %s996
          %s998 = sshll.u32 %s995, 4
          %s999 = int_to_ptr.hbm [resolvable:$true] %s998
          %1004 = dma.vmem_to_hbm [thread:$0]  %s997, 128, %s999, %s958, 32, 32, 2
        $region56: #{tpu_custom_call.1} parent=35 // pred_fallthru
          _
        // Predicated region
        $region57: #{tpu_custom_call.1} parent=35 // pred_check
          %p1005 = pneg %p205
        $region58: #{tpu_custom_call.1} parent=35 // pred_check_branch
          %1007 = sbr.rel (%p1005) target = $region60
        $region59: #{tpu_custom_call.1} parent=35 // pred_region
          %1009 = vsyncadd %s963, 0
          %s1010 = smul.addr %s44, 4
          %s1011 = sadd.s32 %s45, %s1010
          %s1012 = smul.addr %s1011, 2
          %s1013 = scalar_lea.hbm %s5, %s1012
          %s1014 = sshll.u32 %s966, 4
          %s1015 = int_to_ptr.vmem [resolvable:$true] %s1014
          %s1016 = sshll.u32 %s1013, 4
          %s1017 = int_to_ptr.hbm [resolvable:$true] %s1016
          %1022 = dma.vmem_to_hbm [thread:$0]  %s1015, 128, %s1017, %s963, 32, 32, 2
        $region60: #{tpu_custom_call.1} parent=35 // pred_fallthru
          _
        // Predicated region
        $region61: #{tpu_custom_call.1} parent=35 // pred_check
          %p1023 = pneg %p233
        $region62: #{tpu_custom_call.1} parent=35 // pred_check_branch
          %1025 = sbr.rel (%p1023) target = $region64
        $region63: #{tpu_custom_call.1} parent=35 // pred_region
          %1027 = vsyncadd %s968, 0
          %s1028 = smul.addr %s44, 4
          %s1029 = sadd.s32 %s45, %s1028
          %s1030 = smul.addr %s1029, 2
          %s1031 = scalar_lea.hbm %s6, %s1030
          %s1032 = sshll.u32 %s971, 4
          %s1033 = int_to_ptr.vmem [resolvable:$true] %s1032
          %s1034 = sshll.u32 %s1031, 4
          %s1035 = int_to_ptr.hbm [resolvable:$true] %s1034
          %1040 = dma.vmem_to_hbm [thread:$0]  %s1033, 128, %s1035, %s968, 32, 32, 2
        $region64: #{tpu_custom_call.1} parent=35 // pred_fallthru
          _
        // Predicated region
        $region65: #{tpu_custom_call.1} parent=35 // pred_check
          %p1041 = pneg %p261
        $region66: #{tpu_custom_call.1} parent=35 // pred_check_branch
          %1043 = sbr.rel (%p1041) target = $region68
        $region67: #{tpu_custom_call.1} parent=35 // pred_region
          %1045 = vsyncadd %s973, 0
          %s1046 = smul.addr %s44, 4
          %s1047 = sadd.s32 %s45, %s1046
          %s1048 = smul.addr %s1047, 2
          %s1049 = scalar_lea.hbm %s7, %s1048
          %s1050 = sshll.u32 %s976, 4
          %s1051 = int_to_ptr.vmem [resolvable:$true] %s1050
          %s1052 = sshll.u32 %s1049, 4
          %s1053 = int_to_ptr.hbm [resolvable:$true] %s1052
          %1058 = dma.vmem_to_hbm [thread:$0]  %s1051, 128, %s1053, %s973, 32, 32, 2
        $region68: #{tpu_custom_call.1} parent=35 // pred_fallthru
          _
        // Predicated region
        $region69: #{tpu_custom_call.1} parent=35 // pred_check
          %p1059 = pneg %p289
        $region70: #{tpu_custom_call.1} parent=35 // pred_check_branch
          %1061 = sbr.rel (%p1059) target = $region72
        $region71: #{tpu_custom_call.1} parent=35 // pred_region
          %1063 = vsyncadd %s978, 0
          %s1064 = smul.addr %s44, 4
          %s1065 = sadd.s32 %s45, %s1064
          %s1066 = smul.addr %s1065, 2
          %s1067 = scalar_lea.hbm %s8, %s1066
          %s1068 = sshll.u32 %s981, 4
          %s1069 = int_to_ptr.vmem [resolvable:$true] %s1068
          %s1070 = sshll.u32 %s1067, 4
          %s1071 = int_to_ptr.hbm [resolvable:$true] %s1070
          %1076 = dma.vmem_to_hbm [thread:$0]  %s1069, 128, %s1071, %s978, 32, 32, 2
        $region72: #{tpu_custom_call.1} parent=35 // pred_fallthru
          _
        // Predicated region
        $region73: #{tpu_custom_call.1} parent=35 // pred_check
          %p1077 = pneg %p317
        $region74: #{tpu_custom_call.1} parent=35 // pred_check_branch
          %1079 = sbr.rel (%p1077) target = $region76
        $region75: #{tpu_custom_call.1} parent=35 // pred_region
          %1081 = vsyncadd %s983, 0
          %s1082 = smul.addr %s44, 4
          %s1083 = sadd.s32 %s45, %s1082
          %s1084 = smul.addr %s1083, 2
          %s1085 = scalar_lea.hbm %s9, %s1084
          %s1086 = sshll.u32 %s986, 4
          %s1087 = int_to_ptr.vmem [resolvable:$true] %s1086
          %s1088 = sshll.u32 %s1085, 4
          %s1089 = int_to_ptr.hbm [resolvable:$true] %s1088
          %1094 = dma.vmem_to_hbm [thread:$0]  %s1087, 128, %s1089, %s983, 32, 32, 2
        $region76: #{tpu_custom_call.1} parent=35 // pred_fallthru
          _
      $region36: #{tpu_custom_call.1} parent=5 // pred_fallthru
        _
      %p1095 = scmp.le.s32.totalorder 2, %s35
      // Predicated region
      $region77: #{tpu_custom_call.1} parent=5 // pred_check
        %p1096 = pneg %p1095
      $region78: #{tpu_custom_call.1} parent=5 // pred_check_branch
        %1098 = sbr.rel (%p1096) target = $region80
      $region79: #{tpu_custom_call.1} parent=5 // pred_region
        %s1099 = ssub.s32 %s35, 2
        // Predicated region
        $region81: #{tpu_custom_call.1} parent=79 // pred_check
          %p1100 = pneg %p183
        $region82: #{tpu_custom_call.1} parent=79 // pred_check_branch
          %1102 = sbr.rel (%p1100) target = $region84
        $region83: #{tpu_custom_call.1} parent=79 // pred_region
          %s1103 = sand.u32 %s168, 1
          %s1104 = scalar_lea.sflag [#allocation4], %s1103
          %s1105 = sand.u32 %s168, 1
          %s1106 = smul.addr %s1105, 8
          %s1107 = scalar_lea.vmem [#allocation10], %s1106
          %1109 = dma.done %s1104, 128
        $region84: #{tpu_custom_call.1} parent=79 // pred_fallthru
          _
        // Predicated region
        $region85: #{tpu_custom_call.1} parent=79 // pred_check
          %p1110 = pneg %p211
        $region86: #{tpu_custom_call.1} parent=79 // pred_check_branch
          %1112 = sbr.rel (%p1110) target = $region88
        $region87: #{tpu_custom_call.1} parent=79 // pred_region
          %s1113 = sand.u32 %s41, 1
          %s1114 = scalar_lea.sflag [#allocation12], %s1113
          %s1115 = sand.u32 %s196, 1
          %s1116 = smul.addr %s1115, 8
          %s1117 = scalar_lea.vmem [#allocation11], %s1116
          %1119 = dma.done %s1114, 128
        $region88: #{tpu_custom_call.1} parent=79 // pred_fallthru
          _
        // Predicated region
        $region89: #{tpu_custom_call.1} parent=79 // pred_check
          %p1120 = pneg %p239
        $region90: #{tpu_custom_call.1} parent=79 // pred_check_branch
          %1122 = sbr.rel (%p1120) target = $region92
        $region91: #{tpu_custom_call.1} parent=79 // pred_region
          %s1123 = sand.u32 %s41, 1
          %s1124 = scalar_lea.sflag [#allocation12], %s1123
          %s1125 = sand.u32 %s224, 1
          %s1126 = smul.addr %s1125, 8
          %s1127 = scalar_lea.vmem [#allocation13], %s1126
          %1129 = dma.done %s1124, 128
        $region92: #{tpu_custom_call.1} parent=79 // pred_fallthru
          _
        // Predicated region
        $region93: #{tpu_custom_call.1} parent=79 // pred_check
          %p1130 = pneg %p267
        $region94: #{tpu_custom_call.1} parent=79 // pred_check_branch
          %1132 = sbr.rel (%p1130) target = $region96
        $region95: #{tpu_custom_call.1} parent=79 // pred_region
          %s1133 = sand.u32 %s41, 1
          %s1134 = scalar_lea.sflag [#allocation15], %s1133
          %s1135 = sand.u32 %s252, 1
          %s1136 = smul.addr %s1135, 8
          %s1137 = scalar_lea.vmem [#allocation14], %s1136
          %1139 = dma.done %s1134, 128
        $region96: #{tpu_custom_call.1} parent=79 // pred_fallthru
          _
        // Predicated region
        $region97: #{tpu_custom_call.1} parent=79 // pred_check
          %p1140 = pneg %p295
        $region98: #{tpu_custom_call.1} parent=79 // pred_check_branch
          %1142 = sbr.rel (%p1140) target = $region100
        $region99: #{tpu_custom_call.1} parent=79 // pred_region
          %s1143 = sand.u32 %s41, 1
          %s1144 = scalar_lea.sflag [#allocation15], %s1143
          %s1145 = sand.u32 %s280, 1
          %s1146 = smul.addr %s1145, 8
          %s1147 = scalar_lea.vmem [#allocation16], %s1146
          %1149 = dma.done %s1144, 128
        $region100: #{tpu_custom_call.1} parent=79 // pred_fallthru
          _
        // Predicated region
        $region101: #{tpu_custom_call.1} parent=79 // pred_check
          %p1150 = pneg %p323
        $region102: #{tpu_custom_call.1} parent=79 // pred_check_branch
          %1152 = sbr.rel (%p1150) target = $region104
        $region103: #{tpu_custom_call.1} parent=79 // pred_region
          %s1153 = sand.u32 %s308, 1
          %s1154 = scalar_lea.sflag [#allocation18], %s1153
          %s1155 = sand.u32 %s308, 1
          %s1156 = smul.addr %s1155, 8
          %s1157 = scalar_lea.vmem [#allocation17], %s1156
          %1159 = dma.done %s1154, 128
        $region104: #{tpu_custom_call.1} parent=79 // pred_fallthru
          _
      $region80: #{tpu_custom_call.1} parent=5 // pred_fallthru
        _
    $region6: #{tpu_custom_call.1} parent=1 // loop_footer
      %s39 = sadd.s32 1, %s35
    $region7: #{tpu_custom_call.1} parent=1 // loop_footer_branch
      %34 = sbr.rel target = $region3
    $region8: #{tpu_custom_call.1} parent=1 // loop_exit
      _
    %1160 = vsyncpa [#allocation3], 1
    %s1161 = scalar_lea.sflag [#allocation3], 1
    %1162 = vsyncpa %s1161, 1
    %1163 = vsyncpa [#allocation7], 1
    %s1164 = scalar_lea.sflag [#allocation7], 1
    %1165 = vsyncpa %s1164, 1
    %1166 = vsyncpa [#allocation4], 1
    %s1167 = scalar_lea.sflag [#allocation4], 1
    %1168 = vsyncpa %s1167, 1
    %1169 = vsyncpa [#allocation12], 1
    %s1170 = scalar_lea.sflag [#allocation12], 1
    %1171 = vsyncpa %s1170, 1
    %1172 = vsyncpa [#allocation15], 1
    %s1173 = scalar_lea.sflag [#allocation15], 1
    %1174 = vsyncpa %s1173, 1
    %1175 = vsyncpa [#allocation18], 1
    %s1176 = scalar_lea.sflag [#allocation18], 1
    %1177 = vsyncpa %s1176, 1
    %1178 = vsyncpa [#allocation5], 1
    %s1179 = scalar_lea.sflag [#allocation5], 1
    %1180 = vsyncpa %s1179, 1

</llo_original>
